<compile_context>
chip_gen: v7x
topology: tpu7x:2x2x1
jax: 0.10.0
libtpu: 0.0.40
codegen_flags: <defaults>
</compile_context>

<pallas_src>
from functools import partial

import jax
import jax.numpy as jnp
from jax.experimental import pallas as pl
from jax.experimental.pallas import tpu as pltpu


# ---------------------------------------------------------------------------
# Generation-aware VMEM limit (v5e/v6e: 128 MiB physical; v7x: 64 MiB).
# ---------------------------------------------------------------------------
_vmem_limit_cache = None


def _vmem_limit():
    global _vmem_limit_cache
    if _vmem_limit_cache is None:
        try:
            cap = int(pltpu.get_tpu_info().vmem_capacity_bytes)
        except Exception:
            cap = 64 * 1024 * 1024
        _vmem_limit_cache = max(32 * 1024 * 1024, (3 * cap) // 4)
    return _vmem_limit_cache


# ---------------------------------------------------------------------------
# Kernel 1: fused 1x1 expand (+folded BN + padding mask) + ReLU6
#           -> depthwise KxK (stride via phase addressing) + bias + ReLU6
#           -> SE channel sums.  One batch element per grid step.
# ---------------------------------------------------------------------------
def _exp_dw_kernel(x_ref, we_ref, wd_ref, bd_ref, z_ref, sum_ref, yph_ref,
                   *, K, stride, Hph, Wph_pad, Ho, Wo, R):
    s = stride
    nph = s * s
    Cexp = z_ref.shape[-1]
    HWp = Hph * Wph_pad

    # --- expand: BN scale/bias and the DW zero-padding mask are folded into the
    #     weight via the ones-channel, so the epilogue is just ReLU6.  One MXU
    #     dot covers every spatial phase.
    y = jnp.dot(x_ref[0], we_ref[...], preferred_element_type=jnp.float32)
    y = jnp.clip(y, 0.0, 6.0)
    for ph in range(nph):                       # <=4 aligned whole-phase stores
        yph_ref[ph] = y[ph * HWp:(ph + 1) * HWp].reshape(Hph, Wph_pad, Cexp)

    # --- depthwise KxK over output-row strips (bounded live ranges) ----------
    sum_ref[...] = jnp.zeros_like(sum_ref)
    ns = -(-Ho // R)

    def strip(i, r0, mask_rows):
        acc = jnp.zeros((R, Wo, Cexp), jnp.float32)
        for ki in range(K):
            a, ra = ki % s, ki // s
            for kj in range(K):
                b, rb = kj % s, kj // s
                patch = yph_ref[a * s + b, pl.ds(ra + r0, R), pl.ds(rb, Wo), :]
                wk = wd_ref[pl.ds(ki * K + kj, 1), :]   # per-tap load, no wd hoist
                acc = acc + patch * wk
        zf = jnp.clip(acc + bd_ref[...], 0.0, 6.0)      # s_dw pre-folded into wd
        z_ref[0, pl.ds(r0, R), :, :] = zf.astype(z_ref.dtype)
        if mask_rows:                                   # overlapped tail strip:
            rows = r0 + jax.lax.broadcasted_iota(jnp.int32, (R, 1, 1), 0)
            zf = jnp.where(rows >= i * R, zf, 0.0)      # don't double-count sums
        sum_ref[...] += jnp.sum(zf, axis=(0, 1), keepdims=True)

    if ns == 1:
        strip(0, 0, False)
    else:
        def body(i, carry):
            strip(i, jnp.minimum(i * R, Ho - R), True)
            return carry
        jax.lax.fori_loop(0, ns, body, 0)


# ---------------------------------------------------------------------------
# Kernel 2: SE gate for all batch elements in one call (tiny batched FCs)
# ---------------------------------------------------------------------------
def _se_gate_kernel(sum_ref, w1_ref, b1_ref, w2_ref, b2_ref, g_ref, *, inv_hw):
    pooled = (sum_ref[...] * inv_hw).astype(jnp.bfloat16)      # (N, Cexp)
    h = jnp.dot(pooled, w1_ref[...], preferred_element_type=jnp.float32) + b1_ref[...]
    h = jnp.maximum(h, 0.0)
    g = jnp.dot(h.astype(jnp.bfloat16), w2_ref[...],
                preferred_element_type=jnp.float32) + b2_ref[...]
    g_ref[...] = jax.nn.sigmoid(g)


# ---------------------------------------------------------------------------
# Kernel 3: 1x1 project + folded BN (+ residual); SE gate folded into w_proj.
# ---------------------------------------------------------------------------
def _proj_kernel(z_ref, g_ref, w_ref, b_ref, o_ref):
    w_s = (w_ref[...].astype(jnp.float32) * g_ref[0]).astype(jnp.bfloat16)
    y = jnp.dot(z_ref[0], w_s, preferred_element_type=jnp.float32)
    o_ref[0] = (y + b_ref[...]).astype(o_ref.dtype)


def _proj_res_kernel(z_ref, g_ref, w_ref, b_ref, r_ref, o_ref):
    w_s = (w_ref[...].astype(jnp.float32) * g_ref[0]).astype(jnp.bfloat16)
    y = jnp.dot(z_ref[0], w_s, preferred_element_type=jnp.float32)
    o_ref[0] = (y + b_ref[...] + r_ref[0].astype(jnp.float32)).astype(o_ref.dtype)


# ---------------------------------------------------------------------------
# Wrappers
# ---------------------------------------------------------------------------
def _fused_expand_dw(x_nhwc, p, stride, K):
    N, H, W, Cin = x_nhwc.shape
    Cexp = p["w_exp"].shape[1]
    s = stride
    pad = K // 2
    Hp, Wp = H + 2 * pad, W + 2 * pad
    Ho, Wo = (Hp - K) // s + 1, (Wp - K) // s + 1
    Hph, Wph = -(-Hp // s), -(-Wp // s)
    Wph_pad = -(-Wph // 8) * 8                 # sublane-aligned phase rows
    nph = s * s
    HWp = Hph * Wph_pad
    Cin1 = Cin + 1

    # bf16 before pad/split (halves prep HBM bytes).  The ones channel becomes,
    # after zero padding, exactly the "inside the image" mask; folding the
    # expand BN bias onto it makes the DW padding ring come out as exactly 0.
    x_aug = jnp.concatenate(
        [x_nhwc.astype(jnp.bfloat16), jnp.ones((N, H, W, 1), jnp.bfloat16)],
        axis=-1)
    x_pad = jnp.pad(x_aug, ((0, 0), (pad, pad), (pad, pad), (0, 0)))
    if s == 1:
        x_ph = jnp.pad(x_pad, ((0, 0), (0, Hph - Hp), (0, Wph_pad - Wp), (0, 0)))
        x_ph = x_ph.reshape(N, nph * HWp, Cin1)
    else:
        phases = []
        for a in range(s):
            for b in range(s):
                ph = x_pad[:, a::s, b::s, :]
                ph = jnp.pad(ph, ((0, 0), (0, Hph - ph.shape[1]),
                                  (0, Wph_pad - ph.shape[2]), (0, 0)))
                phases.append(ph.reshape(N, HWp, Cin1))
        x_ph = jnp.stack(phases, axis=1).reshape(N, nph * HWp, Cin1)

    # Fold inference BN into the matmul / depthwise weights.
    we_aug = jnp.concatenate(
        [p["w_exp"].astype(jnp.float32) * p["s_exp"], p["b_exp"]], axis=0
    ).astype(jnp.bfloat16)                                    # (Cin+1, Cexp)
    wd_flat = (p["w_dw"] * p["s_dw"]).reshape(K * K, Cexp)    # s_dw folded, f32

    kernel = partial(_exp_dw_kernel, K=K, stride=s, Hph=Hph, Wph_pad=Wph_pad,
                     Ho=Ho, Wo=Wo, R=min(8, Ho))
    z, sums = pl.pallas_call(
        kernel,
        grid=(N,),
        in_specs=[
            pl.BlockSpec((1, nph * HWp, Cin1), lambda n: (n, 0, 0)),
            pl.BlockSpec((Cin1, Cexp), lambda n: (0, 0)),
            pl.BlockSpec((K * K, Cexp), lambda n: (0, 0)),
            pl.BlockSpec((1, Cexp), lambda n: (0, 0)),
        ],
        out_specs=(
            pl.BlockSpec((1, Ho, Wo, Cexp), lambda n: (n, 0, 0, 0)),
            pl.BlockSpec((1, 1, Cexp), lambda n: (n, 0, 0)),
        ),
        out_shape=(
            jax.ShapeDtypeStruct((N, Ho, Wo, Cexp), jnp.bfloat16),
            jax.ShapeDtypeStruct((N, 1, Cexp), jnp.float32),
        ),
        scratch_shapes=[pltpu.VMEM((nph, Hph, Wph_pad, Cexp), jnp.float32)],
        compiler_params=pltpu.CompilerParams(
            dimension_semantics=("parallel",),
            vmem_limit_bytes=_vmem_limit()),
    )(x_ph, we_aug, wd_flat, p["b_dw"])
    return z, sums, Ho, Wo


def _se_gate(sums, p, hw):
    N, _, Cexp = sums.shape
    gate = pl.pallas_call(
        partial(_se_gate_kernel, inv_hw=1.0 / float(hw)),
        out_shape=jax.ShapeDtypeStruct((N, Cexp), jnp.float32),
        compiler_params=pltpu.CompilerParams(vmem_limit_bytes=_vmem_limit()),
    )(sums.reshape(N, Cexp), p["w_se1"], p["b_se1"], p["w_se2"], p["b_se2"])
    return gate.reshape(N, Cexp, 1)      # column layout -> scales w_proj rows


def _project(z, gate_col, p, residual=None):
    N, Ho, Wo, Cexp = z.shape
    Cout = p["w_proj"].shape[1]
    HW = Ho * Wo
    TQ = HW if HW <= 1024 else 1024      # 1024 % 8 == 0; tail masked by Pallas
    nq = pl.cdiv(HW, TQ)
    z2 = z.reshape(N, HW, Cexp)
    w_projf = (p["w_proj"].astype(jnp.float32) * p["s_proj"]).astype(jnp.bfloat16)

    in_specs = [
        pl.BlockSpec((1, TQ, Cexp), lambda n, q: (n, q, 0)),
        pl.BlockSpec((1, Cexp, 1), lambda n, q: (n, 0, 0)),
        pl.BlockSpec((Cexp, Cout), lambda n, q: (0, 0)),
        pl.BlockSpec((1, Cout), lambda n, q: (0, 0)),
    ]
    args = [z2, gate_col, w_projf, p["b_proj"]]
    if residual is None:
        kernel = _proj_kernel
    else:
        Cin = residual.shape[-1]
        in_specs.append(pl.BlockSpec((1, TQ, Cin), lambda n, q: (n, q, 0)))
        args.append(residual.reshape(N, HW, Cin))
        kernel = _proj_res_kernel
    out = pl.pallas_call(
        kernel,
        grid=(N, nq),
        in_specs=in_specs,
        out_specs=pl.BlockSpec((1, TQ, Cout), lambda n, q: (n, q, 0)),
        out_shape=jax.ShapeDtypeStruct((N, HW, Cout), jnp.bfloat16),
        compiler_params=pltpu.CompilerParams(
            dimension_semantics=("parallel", "parallel"),
            vmem_limit_bytes=_vmem_limit()),
    )(*args)
    return out.reshape(N, Ho, Wo, Cout)


def mbconv_block(x_nhwc, p, stride, K):
    """MB6_KxK_se0.25 block: expand -> DW -> SE -> project (+skip)."""
    N, H, W, Cin = x_nhwc.shape
    Cout = p["w_proj"].shape[1]
    z, sums, Ho, Wo = _fused_expand_dw(x_nhwc, p, stride, K)
    gate_col = _se_gate(sums, p, Ho * Wo)
    use_res = (stride == 1) and (Cin == Cout)
    return _project(z, gate_col, p, x_nhwc if use_res else None)


# ---------------------------------------------------------------------------
# Deterministic parameter construction (synthetic; no checkpoint load)
# ---------------------------------------------------------------------------
def init_mbconv_params(key, cin, cout, K, expand=6, se_ratio=0.25):
    cexp = cin * expand
    cse = max(1, int(cexp * se_ratio))
    ks = jax.random.split(key, 5)
    rnd = lambda k, shape: (0.2 * jax.random.normal(k, shape)).astype(jnp.float32)
    ones = lambda c: jnp.ones((1, c), jnp.float32)
    zeros = lambda c: jnp.zeros((1, c), jnp.float32)
    return {
        "w_exp": rnd(ks[0], (cin, cexp)).astype(jnp.bfloat16),
        "s_exp": ones(cexp), "b_exp": zeros(cexp),
        "w_dw": rnd(ks[1], (K, K, cexp)), "s_dw": ones(cexp), "b_dw": zeros(cexp),
        "w_se1": rnd(ks[2], (cexp, cse)).astype(jnp.bfloat16), "b_se1": zeros(cse),
        "w_se2": rnd(ks[3], (cse, cexp)).astype(jnp.bfloat16), "b_se2": zeros(cexp),
        "w_proj": rnd(ks[4], (cexp, cout)).astype(jnp.bfloat16),
        "s_proj": ones(cout), "b_proj": zeros(cout),
    }


PRIMITIVE_KSIZES = (3, 5)   # ['MB6_3x3_se0.25', 'MB6_5x5_se0.25']


class PallasCell:
    """Mirrors SuperNet.Cell: a stack of MixOPs; op selected by index_list."""

    def __init__(self, key, max_in_channels, max_out_channels, stride,
                 init_length, op_cfg=None):
        in_list = [max_in_channels] + [max_out_channels] * (init_length - 1)
        out_list = [max_out_channels] * init_length
        self._init_index_list = op_cfg if op_cfg else [None] * init_length
        self._strides = [stride] + [1] * (init_length - 1)
        self._layers = []
        for i in range(init_length):
            ops = []
            for K in PRIMITIVE_KSIZES:          # both primitives per MixOPs
                key, sub = jax.random.split(key)
                ops.append(init_mbconv_params(sub, in_list[i], out_list[i], K))
            self._layers.append(ops)

    def __call__(self, x_nhwc, index_list=None, sample_length=None):
        index_list = index_list if index_list else self._init_index_list
        for i, ops in enumerate(self._layers[:sample_length]):
            idx = index_list[i] if index_list[i] is not None else 0
            x_nhwc = mbconv_block(x_nhwc, ops[idx], self._strides[i],
                                  PRIMITIVE_KSIZES[idx])
        return x_nhwc


# ---------------------------------------------------------------------------
if __name__ == "__main__":
    key = jax.random.PRNGKey(0)
    kx, kp = jax.random.split(key)

    # PyTorch-convention input: NCHW (2, 4, 16, 16); kernels run in NHWC.
    x_nchw = jax.random.normal(kx, (2, 4, 16, 16), dtype=jnp.float32)
    x_nhwc = jnp.transpose(x_nchw, (0, 2, 3, 1))

    # Cell(max_in=4, max_out=8, stride=2, init_length=2, op_cfg=[0, 1])
    cell = PallasCell(kp, max_in_channels=4, max_out_channels=8, stride=2,
                      init_length=2, op_cfg=[0, 1])

    y = cell(x_nhwc)
    y = jax.block_until_ready(y)
    assert y.shape == (2, 8, 8, 8), y.shape          # NHWC: (N, H/2, W/2, Cout)
    assert jnp.all(jnp.isfinite(y.astype(jnp.float32)))
    print("KERNEL_OK")
</pallas_src>

<mosaic_0001>
module attributes {stable_mosaic.version = 11 : i64} {
  func.func @_exp_dw_kernel(%arg0: i32, %arg1: memref<1x576x5xbf16, #tpu.memory_space<vmem>>, %arg2: memref<5x24xbf16, #tpu.memory_space<vmem>>, %arg3: memref<9x24xf32, #tpu.memory_space<vmem>>, %arg4: memref<1x24xf32, #tpu.memory_space<vmem>>, %arg5: memref<1x8x8x24xbf16, #tpu.memory_space<vmem>>, %arg6: memref<1x1x24xf32, #tpu.memory_space<vmem>>, %arg7: memref<4x9x16x24xf32, #tpu.memory_space<vmem>>) attributes {dimension_semantics = [#tpu.dimension_semantics<parallel>], iteration_bounds = array<i64: 2>, scalar_prefetch = 0 : i64, scratch_operands = 1 : i64, tpu.core_type = #tpu.core_type<tc>, window_params = [{transform_indices = @transform_0, window_bounds = array<i64: 1, 576, 5>}, {pipeline_mode = #tpu.pipeline_mode<synchronous>, transform_indices = @transform_1, window_bounds = array<i64: 5, 24>}, {pipeline_mode = #tpu.pipeline_mode<synchronous>, transform_indices = @transform_2, window_bounds = array<i64: 9, 24>}, {pipeline_mode = #tpu.pipeline_mode<synchronous>, transform_indices = @transform_3, window_bounds = array<i64: 1, 24>}, {transform_indices = @transform_4, window_bounds = array<i64: 1, 8, 8, 24>}, {transform_indices = @transform_5, window_bounds = array<i64: 1, 1, 24>}]} {
    %c0 = arith.constant 0 : index
    %c0_0 = arith.constant 0 : index
    %c0_1 = arith.constant 0 : index
    %0 = vector.load %arg1[%c0, %c0_0, %c0_1] : memref<1x576x5xbf16, #tpu.memory_space<vmem>>, vector<1x576x5xbf16>
    %1 = vector.shape_cast %0 : vector<1x576x5xbf16> to vector<576x5xbf16>
    %c0_2 = arith.constant 0 : index
    %c0_3 = arith.constant 0 : index
    %2 = vector.load %arg2[%c0_2, %c0_3] : memref<5x24xbf16, #tpu.memory_space<vmem>>, vector<5x24xbf16>
    %cst = arith.constant dense<0.000000e+00> : vector<576x24xf32>
    %3 = tpu.matmul %1, %2, %cst {dimension_numbers = #tpu.dot_dimension_numbers<[1], [0], [0], [1], [0, 0, 1, 1], [], []>} : vector<576x5xbf16>, vector<5x24xbf16>, vector<576x24xf32> -> vector<576x24xf32>
    %cst_4 = arith.constant 0.000000e+00 : f32
    %cst_5 = arith.constant 6.000000e+00 : f32
    %4 = vector.broadcast %cst_4 : f32 to vector<576x24xf32>
    %5 = arith.maximumf %4, %3 : vector<576x24xf32>
    %6 = vector.broadcast %cst_5 : f32 to vector<576x24xf32>
    %7 = arith.minimumf %6, %5 : vector<576x24xf32>
    %8 = vector.extract_strided_slice %7 {offsets = [0, 0], sizes = [144, 24], strides = [1, 1]} : vector<576x24xf32> to vector<144x24xf32>
    %9 = vector.shape_cast %8 : vector<144x24xf32> to vector<9x16x24xf32>
    %c0_6 = arith.constant 0 : index
    %c0_7 = arith.constant 0 : index
    %c0_8 = arith.constant 0 : index
    %c0_9 = arith.constant 0 : index
    %10 = vector.load %arg7[%c0_6, %c0_7, %c0_8, %c0_9] : memref<4x9x16x24xf32, #tpu.memory_space<vmem>>, vector<1x9x16x24xf32>
    %11 = vector.shape_cast %10 : vector<1x9x16x24xf32> to vector<9x16x24xf32>
    %12 = vector.shape_cast %9 : vector<9x16x24xf32> to vector<1x9x16x24xf32>
    tpu.vector_store %arg7[%c0_6, %c0_7, %c0_8, %c0_9], %12 {strides = array<i32>} : memref<4x9x16x24xf32, #tpu.memory_space<vmem>>, vector<1x9x16x24xf32>,
    %13 = vector.extract_strided_slice %7 {offsets = [144, 0], sizes = [144, 24], strides = [1, 1]} : vector<576x24xf32> to vector<144x24xf32>
    %14 = vector.shape_cast %13 : vector<144x24xf32> to vector<9x16x24xf32>
    %c1 = arith.constant 1 : index
    %c0_10 = arith.constant 0 : index
    %c0_11 = arith.constant 0 : index
    %c0_12 = arith.constant 0 : index
    %15 = vector.load %arg7[%c1, %c0_10, %c0_11, %c0_12] : memref<4x9x16x24xf32, #tpu.memory_space<vmem>>, vector<1x9x16x24xf32>
    %16 = vector.shape_cast %15 : vector<1x9x16x24xf32> to vector<9x16x24xf32>
    %17 = vector.shape_cast %14 : vector<9x16x24xf32> to vector<1x9x16x24xf32>
    tpu.vector_store %arg7[%c1, %c0_10, %c0_11, %c0_12], %17 {strides = array<i32>} : memref<4x9x16x24xf32, #tpu.memory_space<vmem>>, vector<1x9x16x24xf32>,
    %18 = vector.extract_strided_slice %7 {offsets = [288, 0], sizes = [144, 24], strides = [1, 1]} : vector<576x24xf32> to vector<144x24xf32>
    %19 = vector.shape_cast %18 : vector<144x24xf32> to vector<9x16x24xf32>
    %c2 = arith.constant 2 : index
    %c0_13 = arith.constant 0 : index
    %c0_14 = arith.constant 0 : index
    %c0_15 = arith.constant 0 : index
    %20 = vector.load %arg7[%c2, %c0_13, %c0_14, %c0_15] : memref<4x9x16x24xf32, #tpu.memory_space<vmem>>, vector<1x9x16x24xf32>
    %21 = vector.shape_cast %20 : vector<1x9x16x24xf32> to vector<9x16x24xf32>
    %22 = vector.shape_cast %19 : vector<9x16x24xf32> to vector<1x9x16x24xf32>
    tpu.vector_store %arg7[%c2, %c0_13, %c0_14, %c0_15], %22 {strides = array<i32>} : memref<4x9x16x24xf32, #tpu.memory_space<vmem>>, vector<1x9x16x24xf32>,
    %23 = vector.extract_strided_slice %7 {offsets = [432, 0], sizes = [144, 24], strides = [1, 1]} : vector<576x24xf32> to vector<144x24xf32>
    %24 = vector.shape_cast %23 : vector<144x24xf32> to vector<9x16x24xf32>
    %c3 = arith.constant 3 : index
    %c0_16 = arith.constant 0 : index
    %c0_17 = arith.constant 0 : index
    %c0_18 = arith.constant 0 : index
    %25 = vector.load %arg7[%c3, %c0_16, %c0_17, %c0_18] : memref<4x9x16x24xf32, #tpu.memory_space<vmem>>, vector<1x9x16x24xf32>
    %26 = vector.shape_cast %25 : vector<1x9x16x24xf32> to vector<9x16x24xf32>
    %27 = vector.shape_cast %24 : vector<9x16x24xf32> to vector<1x9x16x24xf32>
    tpu.vector_store %arg7[%c3, %c0_16, %c0_17, %c0_18], %27 {strides = array<i32>} : memref<4x9x16x24xf32, #tpu.memory_space<vmem>>, vector<1x9x16x24xf32>,
    %cst_19 = arith.constant 0.000000e+00 : f32
    %28 = vector.broadcast %cst_19 : f32 to vector<1x1x24xf32>
    %c0_20 = arith.constant 0 : index
    %c0_21 = arith.constant 0 : index
    %c0_22 = arith.constant 0 : index
    %29 = vector.load %arg6[%c0_20, %c0_21, %c0_22] : memref<1x1x24xf32, #tpu.memory_space<vmem>>, vector<1x1x24xf32>
    tpu.vector_store %arg6[%c0_20, %c0_21, %c0_22], %28 {strides = array<i32>} : memref<1x1x24xf32, #tpu.memory_space<vmem>>, vector<1x1x24xf32>,
    %cst_23 = arith.constant 0.000000e+00 : f32
    %30 = vector.broadcast %cst_23 : f32 to vector<8x8x24xf32>
    %c0_24 = arith.constant 0 : index
    %c0_25 = arith.constant 0 : index
    %c0_26 = arith.constant 0 : index
    %c0_27 = arith.constant 0 : index
    %31 = vector.load %arg7[%c0_24, %c0_25, %c0_26, %c0_27] : memref<4x9x16x24xf32, #tpu.memory_space<vmem>>, vector<1x8x8x24xf32>
    %32 = vector.shape_cast %31 : vector<1x8x8x24xf32> to vector<8x8x24xf32>
    %c0_28 = arith.constant 0 : index
    %c0_29 = arith.constant 0 : index
    %33 = vector.load %arg3[%c0_28, %c0_29] : memref<9x24xf32, #tpu.memory_space<vmem>>, vector<1x24xf32>
    %34 = vector.shape_cast %33 : vector<1x24xf32> to vector<1x1x24xf32>
    %35 = vector.broadcast %34 : vector<1x1x24xf32> to vector<8x8x24xf32>
    %36 = arith.mulf %32, %35 : vector<8x8x24xf32>
    %37 = arith.addf %30, %36 : vector<8x8x24xf32>
    %c1_30 = arith.constant 1 : index
    %c0_31 = arith.constant 0 : index
    %c0_32 = arith.constant 0 : index
    %c0_33 = arith.constant 0 : index
    %38 = vector.load %arg7[%c1_30, %c0_31, %c0_32, %c0_33] : memref<4x9x16x24xf32, #tpu.memory_space<vmem>>, vector<1x8x8x24xf32>
    %39 = vector.shape_cast %38 : vector<1x8x8x24xf32> to vector<8x8x24xf32>
    %c1_34 = arith.constant 1 : index
    %c0_35 = arith.constant 0 : index
    %40 = vector.load %arg3[%c1_34, %c0_35] : memref<9x24xf32, #tpu.memory_space<vmem>>, vector<1x24xf32>
    %41 = vector.shape_cast %40 : vector<1x24xf32> to vector<1x1x24xf32>
    %42 = vector.broadcast %41 : vector<1x1x24xf32> to vector<8x8x24xf32>
    %43 = arith.mulf %39, %42 : vector<8x8x24xf32>
    %44 = arith.addf %37, %43 : vector<8x8x24xf32>
    %c0_36 = arith.constant 0 : index
    %c0_37 = arith.constant 0 : index
    %c1_38 = arith.constant 1 : index
    %c0_39 = arith.constant 0 : index
    %45 = vector.load %arg7[%c0_36, %c0_37, %c1_38, %c0_39] : memref<4x9x16x24xf32, #tpu.memory_space<vmem>>, vector<1x8x8x24xf32>
    %46 = vector.shape_cast %45 : vector<1x8x8x24xf32> to vector<8x8x24xf32>
    %c2_40 = arith.constant 2 : index
    %c0_41 = arith.constant 0 : index
    %47 = vector.load %arg3[%c2_40, %c0_41] : memref<9x24xf32, #tpu.memory_space<vmem>>, vector<1x24xf32>
    %48 = vector.shape_cast %47 : vector<1x24xf32> to vector<1x1x24xf32>
    %49 = vector.broadcast %48 : vector<1x1x24xf32> to vector<8x8x24xf32>
    %50 = arith.mulf %46, %49 : vector<8x8x24xf32>
    %51 = arith.addf %44, %50 : vector<8x8x24xf32>
    %c2_42 = arith.constant 2 : index
    %c0_43 = arith.constant 0 : index
    %c0_44 = arith.constant 0 : index
    %c0_45 = arith.constant 0 : index
    %52 = vector.load %arg7[%c2_42, %c0_43, %c0_44, %c0_45] : memref<4x9x16x24xf32, #tpu.memory_space<vmem>>, vector<1x8x8x24xf32>
    %53 = vector.shape_cast %52 : vector<1x8x8x24xf32> to vector<8x8x24xf32>
    %c3_46 = arith.constant 3 : index
    %c0_47 = arith.constant 0 : index
    %54 = vector.load %arg3[%c3_46, %c0_47] : memref<9x24xf32, #tpu.memory_space<vmem>>, vector<1x24xf32>
    %55 = vector.shape_cast %54 : vector<1x24xf32> to vector<1x1x24xf32>
    %56 = vector.broadcast %55 : vector<1x1x24xf32> to vector<8x8x24xf32>
    %57 = arith.mulf %53, %56 : vector<8x8x24xf32>
    %58 = arith.addf %51, %57 : vector<8x8x24xf32>
    %c3_48 = arith.constant 3 : index
    %c0_49 = arith.constant 0 : index
    %c0_50 = arith.constant 0 : index
    %c0_51 = arith.constant 0 : index
    %59 = vector.load %arg7[%c3_48, %c0_49, %c0_50, %c0_51] : memref<4x9x16x24xf32, #tpu.memory_space<vmem>>, vector<1x8x8x24xf32>
    %60 = vector.shape_cast %59 : vector<1x8x8x24xf32> to vector<8x8x24xf32>
    %c4 = arith.constant 4 : index
    %c0_52 = arith.constant 0 : index
    %61 = vector.load %arg3[%c4, %c0_52] : memref<9x24xf32, #tpu.memory_space<vmem>>, vector<1x24xf32>
    %62 = vector.shape_cast %61 : vector<1x24xf32> to vector<1x1x24xf32>
    %63 = vector.broadcast %62 : vector<1x1x24xf32> to vector<8x8x24xf32>
    %64 = arith.mulf %60, %63 : vector<8x8x24xf32>
    %65 = arith.addf %58, %64 : vector<8x8x24xf32>
    %c2_53 = arith.constant 2 : index
    %c0_54 = arith.constant 0 : index
    %c1_55 = arith.constant 1 : index
    %c0_56 = arith.constant 0 : index
    %66 = vector.load %arg7[%c2_53, %c0_54, %c1_55, %c0_56] : memref<4x9x16x24xf32, #tpu.memory_space<vmem>>, vector<1x8x8x24xf32>
    %67 = vector.shape_cast %66 : vector<1x8x8x24xf32> to vector<8x8x24xf32>
    %c5 = arith.constant 5 : index
    %c0_57 = arith.constant 0 : index
    %68 = vector.load %arg3[%c5, %c0_57] : memref<9x24xf32, #tpu.memory_space<vmem>>, vector<1x24xf32>
    %69 = vector.shape_cast %68 : vector<1x24xf32> to vector<1x1x24xf32>
    %70 = vector.broadcast %69 : vector<1x1x24xf32> to vector<8x8x24xf32>
    %71 = arith.mulf %67, %70 : vector<8x8x24xf32>
    %72 = arith.addf %65, %71 : vector<8x8x24xf32>
    %c0_58 = arith.constant 0 : index
    %c1_59 = arith.constant 1 : index
    %c0_60 = arith.constant 0 : index
    %c0_61 = arith.constant 0 : index
    %73 = vector.load %arg7[%c0_58, %c1_59, %c0_60, %c0_61] : memref<4x9x16x24xf32, #tpu.memory_space<vmem>>, vector<1x8x8x24xf32>
    %74 = vector.shape_cast %73 : vector<1x8x8x24xf32> to vector<8x8x24xf32>
    %c6 = arith.constant 6 : index
    %c0_62 = arith.constant 0 : index
    %75 = vector.load %arg3[%c6, %c0_62] : memref<9x24xf32, #tpu.memory_space<vmem>>, vector<1x24xf32>
    %76 = vector.shape_cast %75 : vector<1x24xf32> to vector<1x1x24xf32>
    %77 = vector.broadcast %76 : vector<1x1x24xf32> to vector<8x8x24xf32>
    %78 = arith.mulf %74, %77 : vector<8x8x24xf32>
    %79 = arith.addf %72, %78 : vector<8x8x24xf32>
    %c1_63 = arith.constant 1 : index
    %c1_64 = arith.constant 1 : index
    %c0_65 = arith.constant 0 : index
    %c0_66 = arith.constant 0 : index
    %80 = vector.load %arg7[%c1_63, %c1_64, %c0_65, %c0_66] : memref<4x9x16x24xf32, #tpu.memory_space<vmem>>, vector<1x8x8x24xf32>
    %81 = vector.shape_cast %80 : vector<1x8x8x24xf32> to vector<8x8x24xf32>
    %c7 = arith.constant 7 : index
    %c0_67 = arith.constant 0 : index
    %82 = vector.load %arg3[%c7, %c0_67] : memref<9x24xf32, #tpu.memory_space<vmem>>, vector<1x24xf32>
    %83 = vector.shape_cast %82 : vector<1x24xf32> to vector<1x1x24xf32>
    %84 = vector.broadcast %83 : vector<1x1x24xf32> to vector<8x8x24xf32>
    %85 = arith.mulf %81, %84 : vector<8x8x24xf32>
    %86 = arith.addf %79, %85 : vector<8x8x24xf32>
    %c0_68 = arith.constant 0 : index
    %c1_69 = arith.constant 1 : index
    %c1_70 = arith.constant 1 : index
    %c0_71 = arith.constant 0 : index
    %87 = vector.load %arg7[%c0_68, %c1_69, %c1_70, %c0_71] : memref<4x9x16x24xf32, #tpu.memory_space<vmem>>, vector<1x8x8x24xf32>
    %88 = vector.shape_cast %87 : vector<1x8x8x24xf32> to vector<8x8x24xf32>
    %c8 = arith.constant 8 : index
    %c0_72 = arith.constant 0 : index
    %89 = vector.load %arg3[%c8, %c0_72] : memref<9x24xf32, #tpu.memory_space<vmem>>, vector<1x24xf32>
    %90 = vector.shape_cast %89 : vector<1x24xf32> to vector<1x1x24xf32>
    %91 = vector.broadcast %90 : vector<1x1x24xf32> to vector<8x8x24xf32>
    %92 = arith.mulf %88, %91 : vector<8x8x24xf32>
    %93 = arith.addf %86, %92 : vector<8x8x24xf32>
    %c0_73 = arith.constant 0 : index
    %c0_74 = arith.constant 0 : index
    %94 = vector.load %arg4[%c0_73, %c0_74] : memref<1x24xf32, #tpu.memory_space<vmem>>, vector<1x24xf32>
    %95 = vector.shape_cast %94 : vector<1x24xf32> to vector<1x1x24xf32>
    %96 = vector.broadcast %95 : vector<1x1x24xf32> to vector<8x8x24xf32>
    %97 = arith.addf %93, %96 : vector<8x8x24xf32>
    %cst_75 = arith.constant 0.000000e+00 : f32
    %cst_76 = arith.constant 6.000000e+00 : f32
    %98 = vector.broadcast %cst_75 : f32 to vector<8x8x24xf32>
    %99 = arith.maximumf %98, %97 : vector<8x8x24xf32>
    %100 = vector.broadcast %cst_76 : f32 to vector<8x8x24xf32>
    %101 = arith.minimumf %100, %99 : vector<8x8x24xf32>
    %102 = arith.truncf %101 : vector<8x8x24xf32> to vector<8x8x24xbf16>
    %c0_77 = arith.constant 0 : index
    %c0_78 = arith.constant 0 : index
    %c0_79 = arith.constant 0 : index
    %c0_80 = arith.constant 0 : index
    %103 = vector.load %arg5[%c0_77, %c0_78, %c0_79, %c0_80] : memref<1x8x8x24xbf16, #tpu.memory_space<vmem>>, vector<1x8x8x24xbf16>
    %104 = vector.shape_cast %103 : vector<1x8x8x24xbf16> to vector<8x8x24xbf16>
    %105 = vector.shape_cast %102 : vector<8x8x24xbf16> to vector<1x8x8x24xbf16>
    tpu.vector_store %arg5[%c0_77, %c0_78, %c0_79, %c0_80], %105 {strides = array<i32>} : memref<1x8x8x24xbf16, #tpu.memory_space<vmem>>, vector<1x8x8x24xbf16>,
    %c0_81 = arith.constant 0 : index
    %c0_82 = arith.constant 0 : index
    %c0_83 = arith.constant 0 : index
    %106 = vector.load %arg6[%c0_81, %c0_82, %c0_83] : memref<1x1x24xf32, #tpu.memory_space<vmem>>, vector<1x1x24xf32>
    %cst_84 = arith.constant dense<0.000000e+00> : vector<24xf32>
    %107 = vector.multi_reduction <add>, %101, %cst_84 [0, 1] : vector<8x8x24xf32> to vector<24xf32>
    %108 = vector.shape_cast %107 : vector<24xf32> to vector<1x1x24xf32>
    %109 = arith.addf %106, %108 : vector<1x1x24xf32>
    %c0_85 = arith.constant 0 : index
    %c0_86 = arith.constant 0 : index
    %c0_87 = arith.constant 0 : index
    %110 = vector.load %arg6[%c0_85, %c0_86, %c0_87] : memref<1x1x24xf32, #tpu.memory_space<vmem>>, vector<1x1x24xf32>
    tpu.vector_store %arg6[%c0_85, %c0_86, %c0_87], %109 {strides = array<i32>} : memref<1x1x24xf32, #tpu.memory_space<vmem>>, vector<1x1x24xf32>,
    return
  }
  func.func @transform_0(%arg0: i32) -> (i32, i32, i32) {
    %c0_i32 = arith.constant 0 : i32
    %c0_i32_0 = arith.constant 0 : i32
    %c0_i32_1 = arith.constant 0 : i32
    return %arg0, %c0_i32, %c0_i32_0 : i32, i32, i32
  }
  func.func @transform_1(%arg0: i32) -> (i32, i32) {
    %c0_i32 = arith.constant 0 : i32
    %c0_i32_0 = arith.constant 0 : i32
    %c0_i32_1 = arith.constant 0 : i32
    return %c0_i32, %c0_i32_0 : i32, i32
  }
  func.func @transform_2(%arg0: i32) -> (i32, i32) {
    %c0_i32 = arith.constant 0 : i32
    %c0_i32_0 = arith.constant 0 : i32
    %c0_i32_1 = arith.constant 0 : i32
    return %c0_i32, %c0_i32_0 : i32, i32
  }
  func.func @transform_3(%arg0: i32) -> (i32, i32) {
    %c0_i32 = arith.constant 0 : i32
    %c0_i32_0 = arith.constant 0 : i32
    %c0_i32_1 = arith.constant 0 : i32
    return %c0_i32, %c0_i32_0 : i32, i32
  }
  func.func @transform_4(%arg0: i32) -> (i32, i32, i32, i32) {
    %c0_i32 = arith.constant 0 : i32
    %c0_i32_0 = arith.constant 0 : i32
    %c0_i32_1 = arith.constant 0 : i32
    %c0_i32_2 = arith.constant 0 : i32
    return %arg0, %c0_i32, %c0_i32_0, %c0_i32_1 : i32, i32, i32, i32
  }
  func.func @transform_5(%arg0: i32) -> (i32, i32, i32) {
    %c0_i32 = arith.constant 0 : i32
    %c0_i32_0 = arith.constant 0 : i32
    %c0_i32_1 = arith.constant 0 : i32
    return %arg0, %c0_i32, %c0_i32_0 : i32, i32, i32
  }
}

</mosaic_0001>

<llo_original>
// kernel: tpu_custom_call.1
$region0: #{tpu_custom_call.1}
  #allocation0 [shape = 'u32[]', space=smem, size = 0x4, offset = 0x4, fixed_abs, tag = 'smem constant byte address 0x4 - core index']
  #allocation1 [shape = 'u32[144,128]{1,0:T(1,128)}', space=vmem, size = 0x12000, scoped, tag = 'internal scratch']
  #allocation2 [shape = 'f32[4,9,16,24]{3,2,1,0:T(8,128)}', space=vmem, size = 0x48000, scoped, tag = 'scratch operand']
  %s0 = inlined_call_operand.vmem [shape: bf16[2,576,5], index: 0, kind: input, shape index: {}]
  %s1 = inlined_call_operand.vmem [shape: bf16[5,24], index: 1, kind: input, shape index: {}]
  %s2 = inlined_call_operand.vmem [shape: f32[9,24], index: 2, kind: input, shape index: {}]
  %s3 = inlined_call_operand.vmem [shape: f32[1,24], index: 3, kind: input, shape index: {}]
  %s4 = inlined_call_operand.hbm [shape: bf16[2,8,8,24], index: 4, kind: output, shape index: {0}]
  %s5 = inlined_call_operand.hbm [shape: f32[2,1,24], index: 5, kind: output, shape index: {1}]
  %6 = xla_tuple %s4, %s5
  %s7 = sld [smem:[#allocation0]]
  $region57: #{tpu_custom_call.1} parent=0
    _
  %s9 = ssub.s32 1, %s7
  %s10 = scalar_select 0, %s9, %s7
  $region1: #{tpu_custom_call.1} parent=0
    #allocation3 [shape = 'u8[32768]{0}', space=vmem, size = 0x8000, scoped, tag = 'output window, operand 0']
    #allocation4 [shape = 's32[2]{0}', space=sflag, size = 0x8, scoped, tag = 'scoped memory for tpu_custom_call.1']
    #allocation5 [shape = 'u8[1024]{0}', space=vmem, size = 0x400, scoped, tag = 'output window, operand 1']
    #allocation6 [shape = 's32[2]{0}', space=sflag, size = 0x8, scoped, tag = 'scoped memory for tpu_custom_call.1']
    %11 = vsyncpa [#allocation4], 0
    %s12 = scalar_lea.sflag [#allocation4], 1
    %13 = vsyncpa %s12, 0
    %14 = vsyncpa [#allocation6], 0
    %s15 = scalar_lea.sflag [#allocation6], 1
    %16 = vsyncpa %s15, 0
    loop: start=0, step=1, limit=4
    $region2: #{tpu_custom_call.1} parent=1 // loop_pre_header
      _
    $region3: #{tpu_custom_call.1} parent=1 // loop_header
      %s18 = sphi 0, %s22
      %p19 = scmp.ge.s32.totalorder %s18, 4
      %s28 = sphi 0, %s30
      %s31 = sphi 0, %s28
      %s32 = sphi 0, %s31
      %s48 = sphi 0, %s32
      %s52 = sphi 0, %s52
      %s54 = sphi 0, %s52
      %s55 = sphi 0, %s54
      %s69 = sphi 0, %s55
      %s73 = sphi 0, %s73
      %s75 = sphi 0, %s73
      %s76 = sphi 0, %s75
      %s90 = sphi 0, %s76
      %s94 = sphi 0, %s94
      %s96 = sphi 0, %s94
      %s97 = sphi 0, %s96
      %s111 = sphi 0, %s97
      %s117 = sphi 0, %s119
      %s120 = sphi 0, %s117
      %s121 = sphi 0, %s120
      %s137 = sphi 0, %s121
      %s143 = sphi 0, %s145
      %s146 = sphi 0, %s143
      %s147 = sphi 0, %s146
      %s163 = sphi 0, %s147
    $region4: #{tpu_custom_call.1} parent=1 // loop_header_branch
      %21 = sbr.rel (%p19) target = $region8
    $region5: #{tpu_custom_call.1} parent=1 // loop_body
      %s23 = ssub.s32 %s18, 1
      %s24 = ssub.s32 %s18, 2
      %s25 = sadd.s32 %s18, 1
      %s26 = ssub.s32 %s18, %s25
      %p27 = scmp.eq.s32.totalorder %s26, 0
      %s29 = sadd.s32 %s28, 1
      %s30 = scalar_select %p27, %s28, %s29
      %p33 = pneg %p27
      %p34 = scmp.eq.s32.totalorder %s18, 1
      %p35 = por %p33, %p34
      %p36 = scmp.ne.s32.totalorder %s28, %s31
      %p37 = scmp.eq.s32.totalorder %s18, 0
      %p38 = por %p36, %p37
      %p39 = scmp.ne.s32.totalorder %s28, %s31
      %p40 = scmp.eq.s32.totalorder %s23, 1
      %p41 = por %p39, %p40
      %p42 = scmp.ne.s32.totalorder %s31, %s32
      %p43 = scmp.eq.s32.totalorder %s23, 0
      %p44 = por %p42, %p43
      %p45 = scmp.ne.s32.totalorder %s31, %s32
      %p46 = scmp.eq.s32.totalorder %s24, 1
      %p47 = por %p45, %p46
      %p49 = scmp.ne.s32.totalorder %s32, %s48
      %p50 = scmp.eq.s32.totalorder %s24, 0
      %p51 = por %p49, %p50
      %s53 = sadd.s32 %s52, 1
      %p56 = scmp.eq.s32.totalorder %s18, 1
      %p57 = scmp.ne.s32.totalorder %s52, %s54
      %p58 = scmp.eq.s32.totalorder %s18, 0
      %p59 = por %p57, %p58
      %p60 = scmp.ne.s32.totalorder %s52, %s54
      %p61 = scmp.eq.s32.totalorder %s23, 1
      %p62 = por %p60, %p61
      %p63 = scmp.ne.s32.totalorder %s54, %s55
      %p64 = scmp.eq.s32.totalorder %s23, 0
      %p65 = por %p63, %p64
      %p66 = scmp.ne.s32.totalorder %s54, %s55
      %p67 = scmp.eq.s32.totalorder %s24, 1
      %p68 = por %p66, %p67
      %p70 = scmp.ne.s32.totalorder %s55, %s69
      %p71 = scmp.eq.s32.totalorder %s24, 0
      %p72 = por %p70, %p71
      %s74 = sadd.s32 %s73, 1
      %p77 = scmp.eq.s32.totalorder %s18, 1
      %p78 = scmp.ne.s32.totalorder %s73, %s75
      %p79 = scmp.eq.s32.totalorder %s18, 0
      %p80 = por %p78, %p79
      %p81 = scmp.ne.s32.totalorder %s73, %s75
      %p82 = scmp.eq.s32.totalorder %s23, 1
      %p83 = por %p81, %p82
      %p84 = scmp.ne.s32.totalorder %s75, %s76
      %p85 = scmp.eq.s32.totalorder %s23, 0
      %p86 = por %p84, %p85
      %p87 = scmp.ne.s32.totalorder %s75, %s76
      %p88 = scmp.eq.s32.totalorder %s24, 1
      %p89 = por %p87, %p88
      %p91 = scmp.ne.s32.totalorder %s76, %s90
      %p92 = scmp.eq.s32.totalorder %s24, 0
      %p93 = por %p91, %p92
      %s95 = sadd.s32 %s94, 1
      %p98 = scmp.eq.s32.totalorder %s18, 1
      %p99 = scmp.ne.s32.totalorder %s94, %s96
      %p100 = scmp.eq.s32.totalorder %s18, 0
      %p101 = por %p99, %p100
      %p102 = scmp.ne.s32.totalorder %s94, %s96
      %p103 = scmp.eq.s32.totalorder %s23, 1
      %p104 = por %p102, %p103
      %p105 = scmp.ne.s32.totalorder %s96, %s97
      %p106 = scmp.eq.s32.totalorder %s23, 0
      %p107 = por %p105, %p106
      %p108 = scmp.ne.s32.totalorder %s96, %s97
      %p109 = scmp.eq.s32.totalorder %s24, 1
      %p110 = por %p108, %p109
      %p112 = scmp.ne.s32.totalorder %s97, %s111
      %p113 = scmp.eq.s32.totalorder %s24, 0
      %p114 = por %p112, %p113
      %s115 = ssub.s32 %s18, %s25
      %p116 = scmp.eq.s32.totalorder %s115, 0
      %s118 = sadd.s32 %s117, 1
      %s119 = scalar_select %p116, %s117, %s118
      %p122 = pneg %p116
      %p123 = scmp.eq.s32.totalorder %s18, 1
      %p124 = por %p122, %p123
      %p125 = scmp.ne.s32.totalorder %s117, %s120
      %p126 = scmp.eq.s32.totalorder %s18, 0
      %p127 = por %p125, %p126
      %p128 = scmp.ne.s32.totalorder %s117, %s120
      %p129 = scmp.eq.s32.totalorder %s23, 1
      %p130 = por %p128, %p129
      %p131 = scmp.ne.s32.totalorder %s120, %s121
      %p132 = scmp.eq.s32.totalorder %s23, 0
      %p133 = por %p131, %p132
      %p134 = scmp.ne.s32.totalorder %s120, %s121
      %p135 = scmp.eq.s32.totalorder %s24, 1
      %p136 = por %p134, %p135
      %p138 = scmp.ne.s32.totalorder %s121, %s137
      %p139 = scmp.eq.s32.totalorder %s24, 0
      %p140 = por %p138, %p139
      %s141 = ssub.s32 %s18, %s25
      %p142 = scmp.eq.s32.totalorder %s141, 0
      %s144 = sadd.s32 %s143, 1
      %s145 = scalar_select %p142, %s143, %s144
      %p148 = pneg %p142
      %p149 = scmp.eq.s32.totalorder %s18, 1
      %p150 = por %p148, %p149
      %p151 = scmp.ne.s32.totalorder %s143, %s146
      %p152 = scmp.eq.s32.totalorder %s18, 0
      %p153 = por %p151, %p152
      %p154 = scmp.ne.s32.totalorder %s143, %s146
      %p155 = scmp.eq.s32.totalorder %s23, 1
      %p156 = por %p154, %p155
      %p157 = scmp.ne.s32.totalorder %s146, %s147
      %p158 = scmp.eq.s32.totalorder %s23, 0
      %p159 = por %p157, %p158
      %p160 = scmp.ne.s32.totalorder %s146, %s147
      %p161 = scmp.eq.s32.totalorder %s24, 1
      %p162 = por %p160, %p161
      %p164 = scmp.ne.s32.totalorder %s147, %s163
      %p165 = scmp.eq.s32.totalorder %s24, 0
      %p166 = por %p164, %p165
      %p167 = scmp.le.s32.totalorder 1, %s18
      %p168 = scmp.lt.s32.totalorder %s18, 3
      %p169 = pnand %p167, %p168
      %p170 = pneg %p169
      // Predicated region
      $region9: #{tpu_custom_call.1} parent=5 // pred_check
        _
      $region10: #{tpu_custom_call.1} parent=5 // pred_check_branch
        %172 = sbr.rel (%p169) target = $region12
      $region11: #{tpu_custom_call.1} parent=5 // pred_region
        %s173 = ssub.s32 %s18, 1
        // Predicated region
        $region13: #{tpu_custom_call.1} parent=11 // pred_check
          %p174 = pneg %p65
        $region14: #{tpu_custom_call.1} parent=11 // pred_check_branch
          %176 = sbr.rel (%p174) target = $region16
        $region15: #{tpu_custom_call.1} parent=11 // pred_region
          _
        $region16: #{tpu_custom_call.1} parent=11 // pred_fallthru
          _
        // Predicated region
        $region17: #{tpu_custom_call.1} parent=11 // pred_check
          %p177 = pneg %p86
        $region18: #{tpu_custom_call.1} parent=11 // pred_check_branch
          %179 = sbr.rel (%p177) target = $region20
        $region19: #{tpu_custom_call.1} parent=11 // pred_region
          _
        $region20: #{tpu_custom_call.1} parent=11 // pred_fallthru
          _
        // Predicated region
        $region21: #{tpu_custom_call.1} parent=11 // pred_check
          %p180 = pneg %p107
        $region22: #{tpu_custom_call.1} parent=11 // pred_check_branch
          %182 = sbr.rel (%p180) target = $region24
        $region23: #{tpu_custom_call.1} parent=11 // pred_region
          _
        $region24: #{tpu_custom_call.1} parent=11 // pred_fallthru
          _
      $region12: #{tpu_custom_call.1} parent=5 // pred_fallthru
        _
      %p183 = scmp.lt.s32.totalorder %s18, 2
      // Predicated region
      $region25: #{tpu_custom_call.1} parent=5 // pred_check
        %p184 = pneg %p183
      $region26: #{tpu_custom_call.1} parent=5 // pred_check_branch
        %186 = sbr.rel (%p184) target = $region28
      $region27: #{tpu_custom_call.1} parent=5 // pred_region
        // Predicated region
        $region29: #{tpu_custom_call.1} parent=27 // pred_check
          %p187 = pneg %p38
        $region30: #{tpu_custom_call.1} parent=27 // pred_check_branch
          %189 = sbr.rel (%p187) target = $region32
        $region31: #{tpu_custom_call.1} parent=27 // pred_region
          %p190 = scmp.lt.s32.totalorder %s18, 1
          %s191 = scalar_select %p190, %s18, 1
          %s192 = smul.addr %s191, 72
          %s193 = smul.addr %s192, 4
          %s194 = scalar_lea.vmem %s0, %s193
        $region32: #{tpu_custom_call.1} parent=27 // pred_fallthru
          _
      $region28: #{tpu_custom_call.1} parent=5 // pred_fallthru
        _
      %p195 = scmp.le.s32.totalorder 1, %s18
      %p196 = scmp.lt.s32.totalorder %s18, 3
      %p197 = pnand %p195, %p196
      %p198 = pneg %p197
      // Predicated region
      $region33: #{tpu_custom_call.1} parent=5 // pred_check
        _
      $region34: #{tpu_custom_call.1} parent=5 // pred_check_branch
        %200 = sbr.rel (%p197) target = $region36
      $region35: #{tpu_custom_call.1} parent=5 // pred_region
        %s201 = ssub.s32 %s18, 1
        %p202 = scmp.lt.s32.totalorder %s23, 1
        %s203 = scalar_select %p202, %s23, 1
        %s204 = smul.addr %s203, 72
        %s205 = smul.addr %s204, 4
        %s206 = scalar_lea.vmem %s0, %s205
        %p207 = pneg %p44
        %p208 = pneg %p41
        %p209 = pneg %p65
        %p210 = pneg %p62
        %p211 = pneg %p86
        %p212 = pneg %p83
        %p213 = pneg %p107
        %p214 = pneg %p104
        %p215 = pneg %p133
        %p216 = pneg %p130
        %s217 = sand.u32 %s120, 1
        %s218 = scalar_lea.sflag [#allocation4], %s217
        %s219 = sand.u32 %s120, 1
        %s220 = smul.addr %s219, 32
        %s221 = scalar_lea.vmem [#allocation3], %s220
        %p222 = pneg %p159
        %p223 = pneg %p156
        %s224 = sand.u32 %s146, 1
        %s225 = scalar_lea.sflag [#allocation6], %s224
        %s226 = sand.u32 %s146, 1
        %s227 = scalar_lea.vmem [#allocation5], %s226
        %p228 = scmp.lt.s32.totalorder %s23, 1
        %s229 = scalar_select %p228, %s23, 1
        %s230 = smul.addr %s229, 72
        %s231 = smul.addr %s230, 4
        %s232 = scalar_lea.vmem %s0, %s231
        %v234 = vld [vmem:[%s232] sm:$0xf]
        %v235 = vld [vmem:[%s232 + $0x4] sm:$0xf]
        %v236 = vld [vmem:[%s232 + $0x8] sm:$0xf]
        %v237 = vld [vmem:[%s232 + $0xc] sm:$0xf]
        %v238 = vld [vmem:[%s232 + $0x10] sm:$0xf]
        %v239 = vld [vmem:[%s232 + $0x14] sm:$0xf]
        %v240 = vld [vmem:[%s232 + $0x18] sm:$0xf]
        %v241 = vld [vmem:[%s232 + $0x1c] sm:$0xf]
        %v242 = vld [vmem:[%s232 + $0x20] sm:$0xf]
        %v243 = vld [vmem:[%s232 + $0x24] sm:$0xf]
        %v244 = vld [vmem:[%s232 + $0x28] sm:$0xf]
        %v245 = vld [vmem:[%s232 + $0x2c] sm:$0xf]
        %v246 = vld [vmem:[%s232 + $0x30] sm:$0xf]
        %v247 = vld [vmem:[%s232 + $0x34] sm:$0xf]
        %v248 = vld [vmem:[%s232 + $0x38] sm:$0xf]
        %v249 = vld [vmem:[%s232 + $0x3c] sm:$0xf]
        %v250 = vld [vmem:[%s232 + $0x40] sm:$0xf]
        %v251 = vld [vmem:[%s232 + $0x44] sm:$0xf]
        %v252 = vld [vmem:[%s232 + $0x48] sm:$0xf]
        %v253 = vld [vmem:[%s232 + $0x4c] sm:$0xf]
        %v254 = vld [vmem:[%s232 + $0x50] sm:$0xf]
        %v255 = vld [vmem:[%s232 + $0x54] sm:$0xf]
        %v256 = vld [vmem:[%s232 + $0x58] sm:$0xf]
        %v257 = vld [vmem:[%s232 + $0x5c] sm:$0xf]
        %v258 = vld [vmem:[%s232 + $0x60] sm:$0xf]
        %v259 = vld [vmem:[%s232 + $0x64] sm:$0xf]
        %v260 = vld [vmem:[%s232 + $0x68] sm:$0xf]
        %v261 = vld [vmem:[%s232 + $0x6c] sm:$0xf]
        %v262 = vld [vmem:[%s232 + $0x70] sm:$0xf]
        %v263 = vld [vmem:[%s232 + $0x74] sm:$0xf]
        %v264 = vld [vmem:[%s232 + $0x78] sm:$0xf]
        %v265 = vld [vmem:[%s232 + $0x7c] sm:$0xf]
        %v266 = vld [vmem:[%s232 + $0x80] sm:$0xf]
        %v267 = vld [vmem:[%s232 + $0x84] sm:$0xf]
        %v268 = vld [vmem:[%s232 + $0x88] sm:$0xf]
        %v269 = vld [vmem:[%s232 + $0x8c] sm:$0xf]
        %v270 = vld [vmem:[%s232 + $0x90] sm:$0xf]
        %v271 = vld [vmem:[%s232 + $0x94] sm:$0xf]
        %v272 = vld [vmem:[%s232 + $0x98] sm:$0xf]
        %v273 = vld [vmem:[%s232 + $0x9c] sm:$0xf]
        %v274 = vld [vmem:[%s232 + $0xa0] sm:$0xf]
        %v275 = vld [vmem:[%s232 + $0xa4] sm:$0xf]
        %v276 = vld [vmem:[%s232 + $0xa8] sm:$0xf]
        %v277 = vld [vmem:[%s232 + $0xac] sm:$0xf]
        %v278 = vld [vmem:[%s232 + $0xb0] sm:$0xf]
        %v279 = vld [vmem:[%s232 + $0xb4] sm:$0xf]
        %v280 = vld [vmem:[%s232 + $0xb8] sm:$0xf]
        %v281 = vld [vmem:[%s232 + $0xbc] sm:$0xf]
        %v282 = vld [vmem:[%s232 + $0xc0] sm:$0xf]
        %v283 = vld [vmem:[%s232 + $0xc4] sm:$0xf]
        %v284 = vld [vmem:[%s232 + $0xc8] sm:$0xf]
        %v285 = vld [vmem:[%s232 + $0xcc] sm:$0xf]
        %v286 = vld [vmem:[%s232 + $0xd0] sm:$0xf]
        %v287 = vld [vmem:[%s232 + $0xd4] sm:$0xf]
        %v288 = vld [vmem:[%s232 + $0xd8] sm:$0xf]
        %v289 = vld [vmem:[%s232 + $0xdc] sm:$0xf]
        %v290 = vld [vmem:[%s232 + $0xe0] sm:$0xf]
        %v291 = vld [vmem:[%s232 + $0xe4] sm:$0xf]
        %v292 = vld [vmem:[%s232 + $0xe8] sm:$0xf]
        %v293 = vld [vmem:[%s232 + $0xec] sm:$0xf]
        %v294 = vld [vmem:[%s232 + $0xf0] sm:$0xf]
        %v295 = vld [vmem:[%s232 + $0xf4] sm:$0xf]
        %v296 = vld [vmem:[%s232 + $0xf8] sm:$0xf]
        %v297 = vld [vmem:[%s232 + $0xfc] sm:$0xf]
        %v298 = vld [vmem:[%s232 + $0x100] sm:$0xf]
        %v299 = vld [vmem:[%s232 + $0x104] sm:$0xf]
        %v300 = vld [vmem:[%s232 + $0x108] sm:$0xf]
        %v301 = vld [vmem:[%s232 + $0x10c] sm:$0xf]
        %v302 = vld [vmem:[%s232 + $0x110] sm:$0xf]
        %v303 = vld [vmem:[%s232 + $0x114] sm:$0xf]
        %v304 = vld [vmem:[%s232 + $0x118] sm:$0xf]
        %v305 = vld [vmem:[%s232 + $0x11c] sm:$0xf]
        %v306 = vld [vmem:[%s1] sm:$0x7]
        %v379 = vunpack.c.l.b16 %v234
        %v380 = vunpack.c.l.b16 %v235
        %v381 = vunpack.c.l.b16 %v236
        %v382 = vunpack.c.l.b16 %v237
        %v383 = vunpack.c.l.b16 %v238
        %v384 = vunpack.c.l.b16 %v239
        %v385 = vunpack.c.l.b16 %v240
        %v386 = vunpack.c.l.b16 %v241
        %v387 = vunpack.c.l.b16 %v242
        %v388 = vunpack.c.l.b16 %v243
        %v389 = vunpack.c.l.b16 %v244
        %v390 = vunpack.c.l.b16 %v245
        %v391 = vunpack.c.l.b16 %v246
        %v392 = vunpack.c.l.b16 %v247
        %v393 = vunpack.c.l.b16 %v248
        %v394 = vunpack.c.l.b16 %v249
        %v395 = vunpack.c.l.b16 %v250
        %v396 = vunpack.c.l.b16 %v251
        %v397 = vunpack.c.l.b16 %v252
        %v398 = vunpack.c.l.b16 %v253
        %v399 = vunpack.c.l.b16 %v254
        %v400 = vunpack.c.l.b16 %v255
        %v401 = vunpack.c.l.b16 %v256
        %v402 = vunpack.c.l.b16 %v257
        %v403 = vunpack.c.l.b16 %v258
        %v404 = vunpack.c.l.b16 %v259
        %v405 = vunpack.c.l.b16 %v260
        %v406 = vunpack.c.l.b16 %v261
        %v407 = vunpack.c.l.b16 %v262
        %v408 = vunpack.c.l.b16 %v263
        %v409 = vunpack.c.l.b16 %v264
        %v410 = vunpack.c.l.b16 %v265
        %v411 = vunpack.c.l.b16 %v266
        %v412 = vunpack.c.l.b16 %v267
        %v413 = vunpack.c.l.b16 %v268
        %v414 = vunpack.c.l.b16 %v269
        %v415 = vunpack.c.l.b16 %v270
        %v416 = vunpack.c.l.b16 %v271
        %v417 = vunpack.c.l.b16 %v272
        %v418 = vunpack.c.l.b16 %v273
        %v419 = vunpack.c.l.b16 %v274
        %v420 = vunpack.c.l.b16 %v275
        %v421 = vunpack.c.l.b16 %v276
        %v422 = vunpack.c.l.b16 %v277
        %v423 = vunpack.c.l.b16 %v278
        %v424 = vunpack.c.l.b16 %v279
        %v425 = vunpack.c.l.b16 %v280
        %v426 = vunpack.c.l.b16 %v281
        %v427 = vunpack.c.l.b16 %v282
        %v428 = vunpack.c.l.b16 %v283
        %v429 = vunpack.c.l.b16 %v284
        %v430 = vunpack.c.l.b16 %v285
        %v431 = vunpack.c.l.b16 %v286
        %v432 = vunpack.c.l.b16 %v287
        %v433 = vunpack.c.l.b16 %v288
        %v434 = vunpack.c.l.b16 %v289
        %v435 = vunpack.c.l.b16 %v290
        %v436 = vunpack.c.l.b16 %v291
        %v437 = vunpack.c.l.b16 %v292
        %v438 = vunpack.c.l.b16 %v293
        %v439 = vunpack.c.l.b16 %v294
        %v440 = vunpack.c.l.b16 %v295
        %v441 = vunpack.c.l.b16 %v296
        %v442 = vunpack.c.l.b16 %v297
        %v443 = vunpack.c.l.b16 %v298
        %v444 = vunpack.c.l.b16 %v299
        %v445 = vunpack.c.l.b16 %v300
        %v446 = vunpack.c.l.b16 %v301
        %v447 = vunpack.c.l.b16 %v302
        %v448 = vunpack.c.l.b16 %v303
        %v449 = vunpack.c.l.b16 %v304
        %v450 = vunpack.c.l.b16 %v305
        %v451 = vpack.c.b16 %v380, %v379
        %v452 = vpack.c.b16 %v382, %v381
        %v453 = vpack.c.b16 %v384, %v383
        %v454 = vpack.c.b16 %v386, %v385
        %v455 = vpack.c.b16 %v388, %v387
        %v456 = vpack.c.b16 %v390, %v389
        %v457 = vpack.c.b16 %v392, %v391
        %v458 = vpack.c.b16 %v394, %v393
        %v459 = vpack.c.b16 %v396, %v395
        %v460 = vpack.c.b16 %v398, %v397
        %v461 = vpack.c.b16 %v400, %v399
        %v462 = vpack.c.b16 %v402, %v401
        %v463 = vpack.c.b16 %v404, %v403
        %v464 = vpack.c.b16 %v406, %v405
        %v465 = vpack.c.b16 %v408, %v407
        %v466 = vpack.c.b16 %v410, %v409
        %v467 = vpack.c.b16 %v412, %v411
        %v468 = vpack.c.b16 %v414, %v413
        %v469 = vpack.c.b16 %v416, %v415
        %v470 = vpack.c.b16 %v418, %v417
        %v471 = vpack.c.b16 %v420, %v419
        %v472 = vpack.c.b16 %v422, %v421
        %v473 = vpack.c.b16 %v424, %v423
        %v474 = vpack.c.b16 %v426, %v425
        %v475 = vpack.c.b16 %v428, %v427
        %v476 = vpack.c.b16 %v430, %v429
        %v477 = vpack.c.b16 %v432, %v431
        %v478 = vpack.c.b16 %v434, %v433
        %v479 = vpack.c.b16 %v436, %v435
        %v480 = vpack.c.b16 %v438, %v437
        %v481 = vpack.c.b16 %v440, %v439
        %v482 = vpack.c.b16 %v442, %v441
        %v483 = vpack.c.b16 %v444, %v443
        %v484 = vpack.c.b16 %v446, %v445
        %v485 = vpack.c.b16 %v448, %v447
        %v486 = vpack.c.b16 %v450, %v449
        %vm487 = vcmask 39936
        %v489 = vsel %vm487, %v451, 0
        %v492 = vsel %vm487, %v452, 0
        %v495 = vsel %vm487, %v453, 0
        %v498 = vsel %vm487, %v454, 0
        %v501 = vsel %vm487, %v455, 0
        %v504 = vsel %vm487, %v456, 0
        %v507 = vsel %vm487, %v457, 0
        %v510 = vsel %vm487, %v458, 0
        %v513 = vsel %vm487, %v459, 0
        %v516 = vsel %vm487, %v460, 0
        %v519 = vsel %vm487, %v461, 0
        %v522 = vsel %vm487, %v462, 0
        %v525 = vsel %vm487, %v463, 0
        %v528 = vsel %vm487, %v464, 0
        %v531 = vsel %vm487, %v465, 0
        %v534 = vsel %vm487, %v466, 0
        %v537 = vsel %vm487, %v467, 0
        %v540 = vsel %vm487, %v468, 0
        %v543 = vsel %vm487, %v469, 0
        %v546 = vsel %vm487, %v470, 0
        %v549 = vsel %vm487, %v471, 0
        %v552 = vsel %vm487, %v472, 0
        %v555 = vsel %vm487, %v473, 0
        %v558 = vsel %vm487, %v474, 0
        %v561 = vsel %vm487, %v475, 0
        %v564 = vsel %vm487, %v476, 0
        %v567 = vsel %vm487, %v477, 0
        %v570 = vsel %vm487, %v478, 0
        %v573 = vsel %vm487, %v479, 0
        %v576 = vsel %vm487, %v480, 0
        %v579 = vsel %vm487, %v481, 0
        %v582 = vsel %vm487, %v482, 0
        %v585 = vsel %vm487, %v483, 0
        %v588 = vsel %vm487, %v484, 0
        %v591 = vsel %vm487, %v485, 0
        %v594 = vsel %vm487, %v486, 0
        %vm596 = vcmask 1041408
        %vm597 = vcmask 1042432
        %v598 = vsel %vm596, 4294967295, 65535
        %v599 = vsel %vm597, %v598, 0
        %v601 = vand.u32 %v306, %v599
        %603 = vmatprep.subr.bf16.mxu0 0
        %604 = vmatpush1.bf16.msra.mxu0 %v601
        %605 = vmatprep.subr.bf16.mxu0 0
        %606 = vmatpush1.bf16.msra.mxu0 0
        %607 = vmatprep.subr.bf16.mxu0 0
        %608 = vmatpush1.bf16.msra.mxu0 0
        %609 = vmatprep.subr.bf16.mxu0 0
        %610 = vmatpush1.bf16.msra.mxu0 0
        %611 = vmatprep.subr.bf16.mxu0 0
        %612 = vmatpush1.bf16.msra.mxu0 0
        %613 = vmatprep.subr.bf16.mxu0 0
        %614 = vmatpush1.bf16.msra.mxu0 0
        %615 = vmatprep.subr.bf16.mxu0 0
        %616 = vmatpush1.bf16.msra.mxu0 0
        %617 = vmatprep.subr.bf16.mxu0 0
        %618 = vmatpush1.bf16.msra.mxu0 0
        %619 = vmatprep.subr.bf16.mxu0 0
        %620 = vmatpush1.bf16.msra.mxu0 0
        %621 = vmatprep.subr.bf16.mxu0 0
        %622 = vmatpush1.bf16.msra.mxu0 0
        %623 = vmatprep.subr.bf16.mxu0 0
        %624 = vmatpush1.bf16.msra.mxu0 0
        %625 = vmatprep.subr.bf16.mxu0 0
        %626 = vmatpush1.bf16.msra.mxu0 0
        %627 = vmatprep.subr.bf16.mxu0 0
        %628 = vmatpush1.bf16.msra.mxu0 0
        %629 = vmatprep.subr.bf16.mxu0 0
        %630 = vmatpush1.bf16.msra.mxu0 0
        %631 = vmatprep.subr.bf16.mxu0 0
        %632 = vmatpush1.bf16.msra.mxu0 0
        %633 = vmatprep.subr.bf16.mxu0 0
        %634 = vmatpush1.bf16.msra.mxu0 0
        %635 = vmatprep.mubr.bf16.mxu0 0
        %636 = vmatmul.mubr.bf16.gmra.mrb[0].mxu0 %v489
        %v637 = vpop.f32.mrb[0].mxu0
        %v638 = vadd.f32 0.0, %v637
        %v639 = vpop.f32.mrb[0].mxu0
        %v640 = vpop.f32.mrb[0].mxu0
        %v641 = vadd.f32 0.0, %v640
        %v642 = vpop.f32.mrb[0].mxu0
        %643 = vmatprep.mubr.bf16.mxu0 0
        %644 = vmatmul.mubr.bf16.gmra.mrb[0].mxu0 %v492
        %v645 = vpop.f32.mrb[0].mxu0
        %v646 = vadd.f32 0.0, %v645
        %v647 = vpop.f32.mrb[0].mxu0
        %v648 = vpop.f32.mrb[0].mxu0
        %v649 = vadd.f32 0.0, %v648
        %v650 = vpop.f32.mrb[0].mxu0
        %651 = vmatprep.mubr.bf16.mxu0 0
        %652 = vmatmul.mubr.bf16.gmra.mrb[0].mxu0 %v495
        %v653 = vpop.f32.mrb[0].mxu0
        %v654 = vadd.f32 0.0, %v653
        %v655 = vpop.f32.mrb[0].mxu0
        %v656 = vpop.f32.mrb[0].mxu0
        %v657 = vadd.f32 0.0, %v656
        %v658 = vpop.f32.mrb[0].mxu0
        %659 = vmatprep.mubr.bf16.mxu0 0
        %660 = vmatmul.mubr.bf16.gmra.mrb[0].mxu0 %v498
        %v661 = vpop.f32.mrb[0].mxu0
        %v662 = vadd.f32 0.0, %v661
        %v663 = vpop.f32.mrb[0].mxu0
        %v664 = vpop.f32.mrb[0].mxu0
        %v665 = vadd.f32 0.0, %v664
        %v666 = vpop.f32.mrb[0].mxu0
        %667 = vmatprep.mubr.bf16.mxu0 0
        %668 = vmatmul.mubr.bf16.gmra.mrb[0].mxu0 %v501
        %v669 = vpop.f32.mrb[0].mxu0
        %v670 = vadd.f32 0.0, %v669
        %v671 = vpop.f32.mrb[0].mxu0
        %v672 = vpop.f32.mrb[0].mxu0
        %v673 = vadd.f32 0.0, %v672
        %v674 = vpop.f32.mrb[0].mxu0
        %675 = vmatprep.mubr.bf16.mxu0 0
        %676 = vmatmul.mubr.bf16.gmra.mrb[0].mxu0 %v504
        %v677 = vpop.f32.mrb[0].mxu0
        %v678 = vadd.f32 0.0, %v677
        %v679 = vpop.f32.mrb[0].mxu0
        %v680 = vpop.f32.mrb[0].mxu0
        %v681 = vadd.f32 0.0, %v680
        %v682 = vpop.f32.mrb[0].mxu0
        %683 = vmatprep.mubr.bf16.mxu0 0
        %684 = vmatmul.mubr.bf16.gmra.mrb[0].mxu0 %v507
        %v685 = vpop.f32.mrb[0].mxu0
        %v686 = vadd.f32 0.0, %v685
        %v687 = vpop.f32.mrb[0].mxu0
        %v688 = vpop.f32.mrb[0].mxu0
        %v689 = vadd.f32 0.0, %v688
        %v690 = vpop.f32.mrb[0].mxu0
        %691 = vmatprep.mubr.bf16.mxu0 0
        %692 = vmatmul.mubr.bf16.gmra.mrb[0].mxu0 %v510
        %v693 = vpop.f32.mrb[0].mxu0
        %v694 = vadd.f32 0.0, %v693
        %v695 = vpop.f32.mrb[0].mxu0
        %v696 = vpop.f32.mrb[0].mxu0
        %v697 = vadd.f32 0.0, %v696
        %v698 = vpop.f32.mrb[0].mxu0
        %699 = vmatprep.mubr.bf16.mxu0 0
        %700 = vmatmul.mubr.bf16.gmra.mrb[0].mxu0 %v513
        %v701 = vpop.f32.mrb[0].mxu0
        %v702 = vadd.f32 0.0, %v701
        %v703 = vpop.f32.mrb[0].mxu0
        %v704 = vpop.f32.mrb[0].mxu0
        %v705 = vadd.f32 0.0, %v704
        %v706 = vpop.f32.mrb[0].mxu0
        %707 = vmatprep.mubr.bf16.mxu0 0
        %708 = vmatmul.mubr.bf16.gmra.mrb[0].mxu0 %v516
        %v709 = vpop.f32.mrb[0].mxu0
        %v710 = vadd.f32 0.0, %v709
        %v711 = vpop.f32.mrb[0].mxu0
        %v712 = vpop.f32.mrb[0].mxu0
        %v713 = vadd.f32 0.0, %v712
        %v714 = vpop.f32.mrb[0].mxu0
        %715 = vmatprep.mubr.bf16.mxu0 0
        %716 = vmatmul.mubr.bf16.gmra.mrb[0].mxu0 %v519
        %v717 = vpop.f32.mrb[0].mxu0
        %v718 = vadd.f32 0.0, %v717
        %v719 = vpop.f32.mrb[0].mxu0
        %v720 = vpop.f32.mrb[0].mxu0
        %v721 = vadd.f32 0.0, %v720
        %v722 = vpop.f32.mrb[0].mxu0
        %723 = vmatprep.mubr.bf16.mxu0 0
        %724 = vmatmul.mubr.bf16.gmra.mrb[0].mxu0 %v522
        %v725 = vpop.f32.mrb[0].mxu0
        %v726 = vadd.f32 0.0, %v725
        %v727 = vpop.f32.mrb[0].mxu0
        %v728 = vpop.f32.mrb[0].mxu0
        %v729 = vadd.f32 0.0, %v728
        %v730 = vpop.f32.mrb[0].mxu0
        %731 = vmatprep.mubr.bf16.mxu0 0
        %732 = vmatmul.mubr.bf16.gmra.mrb[0].mxu0 %v525
        %v733 = vpop.f32.mrb[0].mxu0
        %v734 = vadd.f32 0.0, %v733
        %v735 = vpop.f32.mrb[0].mxu0
        %v736 = vpop.f32.mrb[0].mxu0
        %v737 = vadd.f32 0.0, %v736
        %v738 = vpop.f32.mrb[0].mxu0
        %739 = vmatprep.mubr.bf16.mxu0 0
        %740 = vmatmul.mubr.bf16.gmra.mrb[0].mxu0 %v528
        %v741 = vpop.f32.mrb[0].mxu0
        %v742 = vadd.f32 0.0, %v741
        %v743 = vpop.f32.mrb[0].mxu0
        %v744 = vpop.f32.mrb[0].mxu0
        %v745 = vadd.f32 0.0, %v744
        %v746 = vpop.f32.mrb[0].mxu0
        %747 = vmatprep.mubr.bf16.mxu0 0
        %748 = vmatmul.mubr.bf16.gmra.mrb[0].mxu0 %v531
        %v749 = vpop.f32.mrb[0].mxu0
        %v750 = vadd.f32 0.0, %v749
        %v751 = vpop.f32.mrb[0].mxu0
        %v752 = vpop.f32.mrb[0].mxu0
        %v753 = vadd.f32 0.0, %v752
        %v754 = vpop.f32.mrb[0].mxu0
        %755 = vmatprep.mubr.bf16.mxu0 0
        %756 = vmatmul.mubr.bf16.gmra.mrb[0].mxu0 %v534
        %v757 = vpop.f32.mrb[0].mxu0
        %v758 = vadd.f32 0.0, %v757
        %v759 = vpop.f32.mrb[0].mxu0
        %v760 = vpop.f32.mrb[0].mxu0
        %v761 = vadd.f32 0.0, %v760
        %v762 = vpop.f32.mrb[0].mxu0
        %763 = vmatprep.mubr.bf16.mxu0 0
        %764 = vmatmul.mubr.bf16.gmra.mrb[0].mxu0 %v537
        %v765 = vpop.f32.mrb[0].mxu0
        %v766 = vadd.f32 0.0, %v765
        %v767 = vpop.f32.mrb[0].mxu0
        %v768 = vpop.f32.mrb[0].mxu0
        %v769 = vadd.f32 0.0, %v768
        %v770 = vpop.f32.mrb[0].mxu0
        %771 = vmatprep.mubr.bf16.mxu0 0
        %772 = vmatmul.mubr.bf16.gmra.mrb[0].mxu0 %v540
        %v773 = vpop.f32.mrb[0].mxu0
        %v774 = vadd.f32 0.0, %v773
        %v775 = vpop.f32.mrb[0].mxu0
        %v776 = vpop.f32.mrb[0].mxu0
        %v777 = vadd.f32 0.0, %v776
        %v778 = vpop.f32.mrb[0].mxu0
        %779 = vmatprep.mubr.bf16.mxu0 0
        %780 = vmatmul.mubr.bf16.gmra.mrb[0].mxu0 %v543
        %v781 = vpop.f32.mrb[0].mxu0
        %v782 = vadd.f32 0.0, %v781
        %v783 = vpop.f32.mrb[0].mxu0
        %v784 = vpop.f32.mrb[0].mxu0
        %v785 = vadd.f32 0.0, %v784
        %v786 = vpop.f32.mrb[0].mxu0
        %787 = vmatprep.mubr.bf16.mxu0 0
        %788 = vmatmul.mubr.bf16.gmra.mrb[0].mxu0 %v546
        %v789 = vpop.f32.mrb[0].mxu0
        %v790 = vadd.f32 0.0, %v789
        %v791 = vpop.f32.mrb[0].mxu0
        %v792 = vpop.f32.mrb[0].mxu0
        %v793 = vadd.f32 0.0, %v792
        %v794 = vpop.f32.mrb[0].mxu0
        %795 = vmatprep.mubr.bf16.mxu0 0
        %796 = vmatmul.mubr.bf16.gmra.mrb[0].mxu0 %v549
        %v797 = vpop.f32.mrb[0].mxu0
        %v798 = vadd.f32 0.0, %v797
        %v799 = vpop.f32.mrb[0].mxu0
        %v800 = vpop.f32.mrb[0].mxu0
        %v801 = vadd.f32 0.0, %v800
        %v802 = vpop.f32.mrb[0].mxu0
        %803 = vmatprep.mubr.bf16.mxu0 0
        %804 = vmatmul.mubr.bf16.gmra.mrb[0].mxu0 %v552
        %v805 = vpop.f32.mrb[0].mxu0
        %v806 = vadd.f32 0.0, %v805
        %v807 = vpop.f32.mrb[0].mxu0
        %v808 = vpop.f32.mrb[0].mxu0
        %v809 = vadd.f32 0.0, %v808
        %v810 = vpop.f32.mrb[0].mxu0
        %811 = vmatprep.mubr.bf16.mxu0 0
        %812 = vmatmul.mubr.bf16.gmra.mrb[0].mxu0 %v555
        %v813 = vpop.f32.mrb[0].mxu0
        %v814 = vadd.f32 0.0, %v813
        %v815 = vpop.f32.mrb[0].mxu0
        %v816 = vpop.f32.mrb[0].mxu0
        %v817 = vadd.f32 0.0, %v816
        %v818 = vpop.f32.mrb[0].mxu0
        %819 = vmatprep.mubr.bf16.mxu0 0
        %820 = vmatmul.mubr.bf16.gmra.mrb[0].mxu0 %v558
        %v821 = vpop.f32.mrb[0].mxu0
        %v822 = vadd.f32 0.0, %v821
        %v823 = vpop.f32.mrb[0].mxu0
        %v824 = vpop.f32.mrb[0].mxu0
        %v825 = vadd.f32 0.0, %v824
        %v826 = vpop.f32.mrb[0].mxu0
        %827 = vmatprep.mubr.bf16.mxu0 0
        %828 = vmatmul.mubr.bf16.gmra.mrb[0].mxu0 %v561
        %v829 = vpop.f32.mrb[0].mxu0
        %v830 = vadd.f32 0.0, %v829
        %v831 = vpop.f32.mrb[0].mxu0
        %v832 = vpop.f32.mrb[0].mxu0
        %v833 = vadd.f32 0.0, %v832
        %v834 = vpop.f32.mrb[0].mxu0
        %835 = vmatprep.mubr.bf16.mxu0 0
        %836 = vmatmul.mubr.bf16.gmra.mrb[0].mxu0 %v564
        %v837 = vpop.f32.mrb[0].mxu0
        %v838 = vadd.f32 0.0, %v837
        %v839 = vpop.f32.mrb[0].mxu0
        %v840 = vpop.f32.mrb[0].mxu0
        %v841 = vadd.f32 0.0, %v840
        %v842 = vpop.f32.mrb[0].mxu0
        %843 = vmatprep.mubr.bf16.mxu0 0
        %844 = vmatmul.mubr.bf16.gmra.mrb[0].mxu0 %v567
        %v845 = vpop.f32.mrb[0].mxu0
        %v846 = vadd.f32 0.0, %v845
        %v847 = vpop.f32.mrb[0].mxu0
        %v848 = vpop.f32.mrb[0].mxu0
        %v849 = vadd.f32 0.0, %v848
        %v850 = vpop.f32.mrb[0].mxu0
        %851 = vmatprep.mubr.bf16.mxu0 0
        %852 = vmatmul.mubr.bf16.gmra.mrb[0].mxu0 %v570
        %v853 = vpop.f32.mrb[0].mxu0
        %v854 = vadd.f32 0.0, %v853
        %v855 = vpop.f32.mrb[0].mxu0
        %v856 = vpop.f32.mrb[0].mxu0
        %v857 = vadd.f32 0.0, %v856
        %v858 = vpop.f32.mrb[0].mxu0
        %859 = vmatprep.mubr.bf16.mxu0 0
        %860 = vmatmul.mubr.bf16.gmra.mrb[0].mxu0 %v573
        %v861 = vpop.f32.mrb[0].mxu0
        %v862 = vadd.f32 0.0, %v861
        %v863 = vpop.f32.mrb[0].mxu0
        %v864 = vpop.f32.mrb[0].mxu0
        %v865 = vadd.f32 0.0, %v864
        %v866 = vpop.f32.mrb[0].mxu0
        %867 = vmatprep.mubr.bf16.mxu0 0
        %868 = vmatmul.mubr.bf16.gmra.mrb[0].mxu0 %v576
        %v869 = vpop.f32.mrb[0].mxu0
        %v870 = vadd.f32 0.0, %v869
        %v871 = vpop.f32.mrb[0].mxu0
        %v872 = vpop.f32.mrb[0].mxu0
        %v873 = vadd.f32 0.0, %v872
        %v874 = vpop.f32.mrb[0].mxu0
        %875 = vmatprep.mubr.bf16.mxu0 0
        %876 = vmatmul.mubr.bf16.gmra.mrb[0].mxu0 %v579
        %v877 = vpop.f32.mrb[0].mxu0
        %v878 = vadd.f32 0.0, %v877
        %v879 = vpop.f32.mrb[0].mxu0
        %v880 = vpop.f32.mrb[0].mxu0
        %v881 = vadd.f32 0.0, %v880
        %v882 = vpop.f32.mrb[0].mxu0
        %883 = vmatprep.mubr.bf16.mxu0 0
        %884 = vmatmul.mubr.bf16.gmra.mrb[0].mxu0 %v582
        %v885 = vpop.f32.mrb[0].mxu0
        %v886 = vadd.f32 0.0, %v885
        %v887 = vpop.f32.mrb[0].mxu0
        %v888 = vpop.f32.mrb[0].mxu0
        %v889 = vadd.f32 0.0, %v888
        %v890 = vpop.f32.mrb[0].mxu0
        %891 = vmatprep.mubr.bf16.mxu0 0
        %892 = vmatmul.mubr.bf16.gmra.mrb[0].mxu0 %v585
        %v893 = vpop.f32.mrb[0].mxu0
        %v894 = vadd.f32 0.0, %v893
        %v895 = vpop.f32.mrb[0].mxu0
        %v896 = vpop.f32.mrb[0].mxu0
        %v897 = vadd.f32 0.0, %v896
        %v898 = vpop.f32.mrb[0].mxu0
        %899 = vmatprep.mubr.bf16.mxu0 0
        %900 = vmatmul.mubr.bf16.gmra.mrb[0].mxu0 %v588
        %v901 = vpop.f32.mrb[0].mxu0
        %v902 = vadd.f32 0.0, %v901
        %v903 = vpop.f32.mrb[0].mxu0
        %v904 = vpop.f32.mrb[0].mxu0
        %v905 = vadd.f32 0.0, %v904
        %v906 = vpop.f32.mrb[0].mxu0
        %907 = vmatprep.mubr.bf16.mxu0 0
        %908 = vmatmul.mubr.bf16.gmra.mrb[0].mxu0 %v591
        %v909 = vpop.f32.mrb[0].mxu0
        %v910 = vadd.f32 0.0, %v909
        %v911 = vpop.f32.mrb[0].mxu0
        %v912 = vpop.f32.mrb[0].mxu0
        %v913 = vadd.f32 0.0, %v912
        %v914 = vpop.f32.mrb[0].mxu0
        %915 = vmatprep.mubr.bf16.mxu0 0
        %916 = vmatmul.mubr.bf16.gmra.mrb[0].mxu0 %v594
        %v917 = vpop.f32.mrb[0].mxu0
        %v918 = vadd.f32 0.0, %v917
        %v919 = vpop.f32.mrb[0].mxu0
        %v920 = vpop.f32.mrb[0].mxu0
        %v921 = vadd.f32 0.0, %v920
        %v922 = vpop.f32.mrb[0].mxu0
        %923 = vdwg.mxu0
        %v924 = vmax.f32 %v638, 0.0
        %v925 = vmax.f32 %v641, 0.0
        %v926 = vmax.f32 %v646, 0.0
        %v927 = vmax.f32 %v649, 0.0
        %v928 = vmax.f32 %v654, 0.0
        %v929 = vmax.f32 %v657, 0.0
        %v930 = vmax.f32 %v662, 0.0
        %v931 = vmax.f32 %v665, 0.0
        %v932 = vmax.f32 %v670, 0.0
        %v933 = vmax.f32 %v673, 0.0
        %v934 = vmax.f32 %v678, 0.0
        %v935 = vmax.f32 %v681, 0.0
        %v936 = vmax.f32 %v686, 0.0
        %v937 = vmax.f32 %v689, 0.0
        %v938 = vmax.f32 %v694, 0.0
        %v939 = vmax.f32 %v697, 0.0
        %v940 = vmax.f32 %v702, 0.0
        %v941 = vmax.f32 %v705, 0.0
        %v942 = vmax.f32 %v710, 0.0
        %v943 = vmax.f32 %v713, 0.0
        %v944 = vmax.f32 %v718, 0.0
        %v945 = vmax.f32 %v721, 0.0
        %v946 = vmax.f32 %v726, 0.0
        %v947 = vmax.f32 %v729, 0.0
        %v948 = vmax.f32 %v734, 0.0
        %v949 = vmax.f32 %v737, 0.0
        %v950 = vmax.f32 %v742, 0.0
        %v951 = vmax.f32 %v745, 0.0
        %v952 = vmax.f32 %v750, 0.0
        %v953 = vmax.f32 %v753, 0.0
        %v954 = vmax.f32 %v758, 0.0
        %v955 = vmax.f32 %v761, 0.0
        %v956 = vmax.f32 %v766, 0.0
        %v957 = vmax.f32 %v769, 0.0
        %v958 = vmax.f32 %v774, 0.0
        %v959 = vmax.f32 %v777, 0.0
        %v960 = vmax.f32 %v782, 0.0
        %v961 = vmax.f32 %v785, 0.0
        %v962 = vmax.f32 %v790, 0.0
        %v963 = vmax.f32 %v793, 0.0
        %v964 = vmax.f32 %v798, 0.0
        %v965 = vmax.f32 %v801, 0.0
        %v966 = vmax.f32 %v806, 0.0
        %v967 = vmax.f32 %v809, 0.0
        %v968 = vmax.f32 %v814, 0.0
        %v969 = vmax.f32 %v817, 0.0
        %v970 = vmax.f32 %v822, 0.0
        %v971 = vmax.f32 %v825, 0.0
        %v972 = vmax.f32 %v830, 0.0
        %v973 = vmax.f32 %v833, 0.0
        %v974 = vmax.f32 %v838, 0.0
        %v975 = vmax.f32 %v841, 0.0
        %v976 = vmax.f32 %v846, 0.0
        %v977 = vmax.f32 %v849, 0.0
        %v978 = vmax.f32 %v854, 0.0
        %v979 = vmax.f32 %v857, 0.0
        %v980 = vmax.f32 %v862, 0.0
        %v981 = vmax.f32 %v865, 0.0
        %v982 = vmax.f32 %v870, 0.0
        %v983 = vmax.f32 %v873, 0.0
        %v984 = vmax.f32 %v878, 0.0
        %v985 = vmax.f32 %v881, 0.0
        %v986 = vmax.f32 %v886, 0.0
        %v987 = vmax.f32 %v889, 0.0
        %v988 = vmax.f32 %v894, 0.0
        %v989 = vmax.f32 %v897, 0.0
        %v990 = vmax.f32 %v902, 0.0
        %v991 = vmax.f32 %v905, 0.0
        %v992 = vmax.f32 %v910, 0.0
        %v993 = vmax.f32 %v913, 0.0
        %v994 = vmax.f32 %v918, 0.0
        %v995 = vmax.f32 %v921, 0.0
        %v996 = vmin.f32 %v924, 6.0
        %v997 = vmin.f32 %v925, 6.0
        %v998 = vmin.f32 %v926, 6.0
        %v999 = vmin.f32 %v927, 6.0
        %v1000 = vmin.f32 %v928, 6.0
        %v1001 = vmin.f32 %v929, 6.0
        %v1002 = vmin.f32 %v930, 6.0
        %v1003 = vmin.f32 %v931, 6.0
        %v1004 = vmin.f32 %v932, 6.0
        %v1005 = vmin.f32 %v933, 6.0
        %v1006 = vmin.f32 %v934, 6.0
        %v1007 = vmin.f32 %v935, 6.0
        %v1008 = vmin.f32 %v936, 6.0
        %v1009 = vmin.f32 %v937, 6.0
        %v1010 = vmin.f32 %v938, 6.0
        %v1011 = vmin.f32 %v939, 6.0
        %v1012 = vmin.f32 %v940, 6.0
        %v1013 = vmin.f32 %v941, 6.0
        %v1014 = vmin.f32 %v942, 6.0
        %v1015 = vmin.f32 %v943, 6.0
        %v1016 = vmin.f32 %v944, 6.0
        %v1017 = vmin.f32 %v945, 6.0
        %v1018 = vmin.f32 %v946, 6.0
        %v1019 = vmin.f32 %v947, 6.0
        %v1020 = vmin.f32 %v948, 6.0
        %v1021 = vmin.f32 %v949, 6.0
        %v1022 = vmin.f32 %v950, 6.0
        %v1023 = vmin.f32 %v951, 6.0
        %v1024 = vmin.f32 %v952, 6.0
        %v1025 = vmin.f32 %v953, 6.0
        %v1026 = vmin.f32 %v954, 6.0
        %v1027 = vmin.f32 %v955, 6.0
        %v1028 = vmin.f32 %v956, 6.0
        %v1029 = vmin.f32 %v957, 6.0
        %v1030 = vmin.f32 %v958, 6.0
        %v1031 = vmin.f32 %v959, 6.0
        %v1032 = vmin.f32 %v960, 6.0
        %v1033 = vmin.f32 %v961, 6.0
        %v1034 = vmin.f32 %v962, 6.0
        %v1035 = vmin.f32 %v963, 6.0
        %v1036 = vmin.f32 %v964, 6.0
        %v1037 = vmin.f32 %v965, 6.0
        %v1038 = vmin.f32 %v966, 6.0
        %v1039 = vmin.f32 %v967, 6.0
        %v1040 = vmin.f32 %v968, 6.0
        %v1041 = vmin.f32 %v969, 6.0
        %v1042 = vmin.f32 %v970, 6.0
        %v1043 = vmin.f32 %v971, 6.0
        %v1044 = vmin.f32 %v972, 6.0
        %v1045 = vmin.f32 %v973, 6.0
        %v1046 = vmin.f32 %v974, 6.0
        %v1047 = vmin.f32 %v975, 6.0
        %v1048 = vmin.f32 %v976, 6.0
        %v1049 = vmin.f32 %v977, 6.0
        %v1050 = vmin.f32 %v978, 6.0
        %v1051 = vmin.f32 %v979, 6.0
        %v1052 = vmin.f32 %v980, 6.0
        %v1053 = vmin.f32 %v981, 6.0
        %v1054 = vmin.f32 %v982, 6.0
        %v1055 = vmin.f32 %v983, 6.0
        %v1056 = vmin.f32 %v984, 6.0
        %v1057 = vmin.f32 %v985, 6.0
        %v1058 = vmin.f32 %v986, 6.0
        %v1059 = vmin.f32 %v987, 6.0
        %v1060 = vmin.f32 %v988, 6.0
        %v1061 = vmin.f32 %v989, 6.0
        %v1062 = vmin.f32 %v990, 6.0
        %v1063 = vmin.f32 %v991, 6.0
        %v1064 = vmin.f32 %v992, 6.0
        %v1065 = vmin.f32 %v993, 6.0
        %v1066 = vmin.f32 %v994, 6.0
        %v1067 = vmin.f32 %v995, 6.0
        %vm1068 = vcmask 195584
        %1069 = vst.msk [vmem:[#allocation2] sm:$0xff] %vm1068, %v996
        %1070 = vst.msk [vmem:[#allocation2 + $0x8] sm:$0xff] %vm1068, %v997
        %1071 = vst.msk [vmem:[#allocation2 + $0x10] sm:$0xff] %vm1068, %v998
        %1072 = vst.msk [vmem:[#allocation2 + $0x18] sm:$0xff] %vm1068, %v999
        %1073 = vst.msk [vmem:[#allocation2 + $0x20] sm:$0xff] %vm1068, %v1000
        %1074 = vst.msk [vmem:[#allocation2 + $0x28] sm:$0xff] %vm1068, %v1001
        %1075 = vst.msk [vmem:[#allocation2 + $0x30] sm:$0xff] %vm1068, %v1002
        %1076 = vst.msk [vmem:[#allocation2 + $0x38] sm:$0xff] %vm1068, %v1003
        %1077 = vst.msk [vmem:[#allocation2 + $0x40] sm:$0xff] %vm1068, %v1004
        %1078 = vst.msk [vmem:[#allocation2 + $0x48] sm:$0xff] %vm1068, %v1005
        %1079 = vst.msk [vmem:[#allocation2 + $0x50] sm:$0xff] %vm1068, %v1006
        %1080 = vst.msk [vmem:[#allocation2 + $0x58] sm:$0xff] %vm1068, %v1007
        %1081 = vst.msk [vmem:[#allocation2 + $0x60] sm:$0xff] %vm1068, %v1008
        %1082 = vst.msk [vmem:[#allocation2 + $0x68] sm:$0xff] %vm1068, %v1009
        %1083 = vst.msk [vmem:[#allocation2 + $0x70] sm:$0xff] %vm1068, %v1010
        %1084 = vst.msk [vmem:[#allocation2 + $0x78] sm:$0xff] %vm1068, %v1011
        %1085 = vst.msk [vmem:[#allocation2 + $0x80] sm:$0xff] %vm1068, %v1012
        %1086 = vst.msk [vmem:[#allocation2 + $0x88] sm:$0xff] %vm1068, %v1013
        %s1087 = scalar_lea.vmem [#allocation2], 144
        %1088 = vst.msk [vmem:[%s1087] sm:$0xff] %vm1068, %v1014
        %1089 = vst.msk [vmem:[%s1087 + $0x8] sm:$0xff] %vm1068, %v1015
        %1090 = vst.msk [vmem:[%s1087 + $0x10] sm:$0xff] %vm1068, %v1016
        %1091 = vst.msk [vmem:[%s1087 + $0x18] sm:$0xff] %vm1068, %v1017
        %1092 = vst.msk [vmem:[%s1087 + $0x20] sm:$0xff] %vm1068, %v1018
        %1093 = vst.msk [vmem:[%s1087 + $0x28] sm:$0xff] %vm1068, %v1019
        %1094 = vst.msk [vmem:[%s1087 + $0x30] sm:$0xff] %vm1068, %v1020
        %1095 = vst.msk [vmem:[%s1087 + $0x38] sm:$0xff] %vm1068, %v1021
        %1096 = vst.msk [vmem:[%s1087 + $0x40] sm:$0xff] %vm1068, %v1022
        %1097 = vst.msk [vmem:[%s1087 + $0x48] sm:$0xff] %vm1068, %v1023
        %1098 = vst.msk [vmem:[%s1087 + $0x50] sm:$0xff] %vm1068, %v1024
        %1099 = vst.msk [vmem:[%s1087 + $0x58] sm:$0xff] %vm1068, %v1025
        %1100 = vst.msk [vmem:[%s1087 + $0x60] sm:$0xff] %vm1068, %v1026
        %1101 = vst.msk [vmem:[%s1087 + $0x68] sm:$0xff] %vm1068, %v1027
        %1102 = vst.msk [vmem:[%s1087 + $0x70] sm:$0xff] %vm1068, %v1028
        %1103 = vst.msk [vmem:[%s1087 + $0x78] sm:$0xff] %vm1068, %v1029
        %1104 = vst.msk [vmem:[%s1087 + $0x80] sm:$0xff] %vm1068, %v1030
        %1105 = vst.msk [vmem:[%s1087 + $0x88] sm:$0xff] %vm1068, %v1031
        %s1106 = scalar_lea.vmem [#allocation2], 288
        %1107 = vst.msk [vmem:[%s1106] sm:$0xff] %vm1068, %v1032
        %1108 = vst.msk [vmem:[%s1106 + $0x8] sm:$0xff] %vm1068, %v1033
        %1109 = vst.msk [vmem:[%s1106 + $0x10] sm:$0xff] %vm1068, %v1034
        %1110 = vst.msk [vmem:[%s1106 + $0x18] sm:$0xff] %vm1068, %v1035
        %1111 = vst.msk [vmem:[%s1106 + $0x20] sm:$0xff] %vm1068, %v1036
        %1112 = vst.msk [vmem:[%s1106 + $0x28] sm:$0xff] %vm1068, %v1037
        %1113 = vst.msk [vmem:[%s1106 + $0x30] sm:$0xff] %vm1068, %v1038
        %1114 = vst.msk [vmem:[%s1106 + $0x38] sm:$0xff] %vm1068, %v1039
        %1115 = vst.msk [vmem:[%s1106 + $0x40] sm:$0xff] %vm1068, %v1040
        %1116 = vst.msk [vmem:[%s1106 + $0x48] sm:$0xff] %vm1068, %v1041
        %1117 = vst.msk [vmem:[%s1106 + $0x50] sm:$0xff] %vm1068, %v1042
        %1118 = vst.msk [vmem:[%s1106 + $0x58] sm:$0xff] %vm1068, %v1043
        %1119 = vst.msk [vmem:[%s1106 + $0x60] sm:$0xff] %vm1068, %v1044
        %1120 = vst.msk [vmem:[%s1106 + $0x68] sm:$0xff] %vm1068, %v1045
        %1121 = vst.msk [vmem:[%s1106 + $0x70] sm:$0xff] %vm1068, %v1046
        %1122 = vst.msk [vmem:[%s1106 + $0x78] sm:$0xff] %vm1068, %v1047
        %1123 = vst.msk [vmem:[%s1106 + $0x80] sm:$0xff] %vm1068, %v1048
        %1124 = vst.msk [vmem:[%s1106 + $0x88] sm:$0xff] %vm1068, %v1049
        %s1125 = scalar_lea.vmem [#allocation2], 432
        %1126 = vst.msk [vmem:[%s1125] sm:$0xff] %vm1068, %v1050
        %1127 = vst.msk [vmem:[%s1125 + $0x8] sm:$0xff] %vm1068, %v1051
        %1128 = vst.msk [vmem:[%s1125 + $0x10] sm:$0xff] %vm1068, %v1052
        %1129 = vst.msk [vmem:[%s1125 + $0x18] sm:$0xff] %vm1068, %v1053
        %1130 = vst.msk [vmem:[%s1125 + $0x20] sm:$0xff] %vm1068, %v1054
        %1131 = vst.msk [vmem:[%s1125 + $0x28] sm:$0xff] %vm1068, %v1055
        %1132 = vst.msk [vmem:[%s1125 + $0x30] sm:$0xff] %vm1068, %v1056
        %1133 = vst.msk [vmem:[%s1125 + $0x38] sm:$0xff] %vm1068, %v1057
        %1134 = vst.msk [vmem:[%s1125 + $0x40] sm:$0xff] %vm1068, %v1058
        %1135 = vst.msk [vmem:[%s1125 + $0x48] sm:$0xff] %vm1068, %v1059
        %1136 = vst.msk [vmem:[%s1125 + $0x50] sm:$0xff] %vm1068, %v1060
        %1137 = vst.msk [vmem:[%s1125 + $0x58] sm:$0xff] %vm1068, %v1061
        %1138 = vst.msk [vmem:[%s1125 + $0x60] sm:$0xff] %vm1068, %v1062
        %1139 = vst.msk [vmem:[%s1125 + $0x68] sm:$0xff] %vm1068, %v1063
        %1140 = vst.msk [vmem:[%s1125 + $0x70] sm:$0xff] %vm1068, %v1064
        %1141 = vst.msk [vmem:[%s1125 + $0x78] sm:$0xff] %vm1068, %v1065
        %1142 = vst.msk [vmem:[%s1125 + $0x80] sm:$0xff] %vm1068, %v1066
        %1143 = vst.msk [vmem:[%s1125 + $0x88] sm:$0xff] %vm1068, %v1067
        %vm1144 = vcmask 188416
        %1145 = vst.msk [vmem:[%s227] sm:$0x1] %vm1144, 0.0
        %v1146 = vld [vmem:[#allocation2] sm:$0xff]
        %v1147 = vld [vmem:[#allocation2 + $0x10] sm:$0xff]
        %v1148 = vld [vmem:[#allocation2 + $0x20] sm:$0xff]
        %v1149 = vld [vmem:[#allocation2 + $0x30] sm:$0xff]
        %v1150 = vld [vmem:[#allocation2 + $0x40] sm:$0xff]
        %v1151 = vld [vmem:[#allocation2 + $0x50] sm:$0xff]
        %v1152 = vld [vmem:[#allocation2 + $0x60] sm:$0xff]
        %v1153 = vld [vmem:[#allocation2 + $0x70] sm:$0xff]
        %v1154 = vld [vmem:[%s2] sm:$0x1]
        %v1155 = vlaneseq
        %v1156 = vshrl.u32 %v1155, 7
        %v1157 = vsub.s32 0, %v1156
        %v1158 = vrot.slane %v1154, %v1157
        %v1159 = vmul.f32 %v1146, %v1158
        %v1160 = vmul.f32 %v1147, %v1158
        %v1161 = vmul.f32 %v1148, %v1158
        %v1162 = vmul.f32 %v1149, %v1158
        %v1163 = vmul.f32 %v1150, %v1158
        %v1164 = vmul.f32 %v1151, %v1158
        %v1165 = vmul.f32 %v1152, %v1158
        %v1166 = vmul.f32 %v1153, %v1158
        %v1167 = vadd.f32 %v1159, 0.0
        %v1168 = vadd.f32 %v1160, 0.0
        %v1169 = vadd.f32 %v1161, 0.0
        %v1170 = vadd.f32 %v1162, 0.0
        %v1171 = vadd.f32 %v1163, 0.0
        %v1172 = vadd.f32 %v1164, 0.0
        %v1173 = vadd.f32 %v1165, 0.0
        %v1174 = vadd.f32 %v1166, 0.0
        %v1175 = vld [vmem:[%s1087] sm:$0xff]
        %v1176 = vld [vmem:[%s1087 + $0x10] sm:$0xff]
        %v1177 = vld [vmem:[%s1087 + $0x20] sm:$0xff]
        %v1178 = vld [vmem:[%s1087 + $0x30] sm:$0xff]
        %v1179 = vld [vmem:[%s1087 + $0x40] sm:$0xff]
        %v1180 = vld [vmem:[%s1087 + $0x50] sm:$0xff]
        %v1181 = vld [vmem:[%s1087 + $0x60] sm:$0xff]
        %v1182 = vld [vmem:[%s1087 + $0x70] sm:$0xff]
        %v1183 = vld [vmem:[%s2 + $0x1] sm:$0x1]
        %v1184 = vlaneseq
        %v1185 = vshrl.u32 %v1184, 7
        %v1186 = vsub.s32 0, %v1185
        %v1187 = vrot.slane %v1183, %v1186
        %v1188 = vmul.f32 %v1175, %v1187
        %v1189 = vmul.f32 %v1176, %v1187
        %v1190 = vmul.f32 %v1177, %v1187
        %v1191 = vmul.f32 %v1178, %v1187
        %v1192 = vmul.f32 %v1179, %v1187
        %v1193 = vmul.f32 %v1180, %v1187
        %v1194 = vmul.f32 %v1181, %v1187
        %v1195 = vmul.f32 %v1182, %v1187
        %v1196 = vadd.f32 %v1167, %v1188
        %v1197 = vadd.f32 %v1168, %v1189
        %v1198 = vadd.f32 %v1169, %v1190
        %v1199 = vadd.f32 %v1170, %v1191
        %v1200 = vadd.f32 %v1171, %v1192
        %v1201 = vadd.f32 %v1172, %v1193
        %v1202 = vadd.f32 %v1173, %v1194
        %v1203 = vadd.f32 %v1174, %v1195
        %v1204 = vld [vmem:[#allocation2 + $0x1] sm:$0xff]
        %v1205 = vld [vmem:[#allocation2 + $0x11] sm:$0xff]
        %v1206 = vld [vmem:[#allocation2 + $0x21] sm:$0xff]
        %v1207 = vld [vmem:[#allocation2 + $0x31] sm:$0xff]
        %v1208 = vld [vmem:[#allocation2 + $0x41] sm:$0xff]
        %v1209 = vld [vmem:[#allocation2 + $0x51] sm:$0xff]
        %v1210 = vld [vmem:[#allocation2 + $0x61] sm:$0xff]
        %v1211 = vld [vmem:[#allocation2 + $0x71] sm:$0xff]
        %v1212 = vld [vmem:[%s2 + $0x2] sm:$0x1]
        %v1213 = vlaneseq
        %v1214 = vshrl.u32 %v1213, 7
        %v1215 = vsub.s32 0, %v1214
        %v1216 = vrot.slane %v1212, %v1215
        %v1217 = vmul.f32 %v1204, %v1216
        %v1218 = vmul.f32 %v1205, %v1216
        %v1219 = vmul.f32 %v1206, %v1216
        %v1220 = vmul.f32 %v1207, %v1216
        %v1221 = vmul.f32 %v1208, %v1216
        %v1222 = vmul.f32 %v1209, %v1216
        %v1223 = vmul.f32 %v1210, %v1216
        %v1224 = vmul.f32 %v1211, %v1216
        %v1225 = vadd.f32 %v1196, %v1217
        %v1226 = vadd.f32 %v1197, %v1218
        %v1227 = vadd.f32 %v1198, %v1219
        %v1228 = vadd.f32 %v1199, %v1220
        %v1229 = vadd.f32 %v1200, %v1221
        %v1230 = vadd.f32 %v1201, %v1222
        %v1231 = vadd.f32 %v1202, %v1223
        %v1232 = vadd.f32 %v1203, %v1224
        %v1233 = vld [vmem:[%s1106] sm:$0xff]
        %v1234 = vld [vmem:[%s1106 + $0x10] sm:$0xff]
        %v1235 = vld [vmem:[%s1106 + $0x20] sm:$0xff]
        %v1236 = vld [vmem:[%s1106 + $0x30] sm:$0xff]
        %v1237 = vld [vmem:[%s1106 + $0x40] sm:$0xff]
        %v1238 = vld [vmem:[%s1106 + $0x50] sm:$0xff]
        %v1239 = vld [vmem:[%s1106 + $0x60] sm:$0xff]
        %v1240 = vld [vmem:[%s1106 + $0x70] sm:$0xff]
        %v1241 = vld [vmem:[%s2 + $0x3] sm:$0x1]
        %v1242 = vlaneseq
        %v1243 = vshrl.u32 %v1242, 7
        %v1244 = vsub.s32 0, %v1243
        %v1245 = vrot.slane %v1241, %v1244
        %v1246 = vmul.f32 %v1233, %v1245
        %v1247 = vmul.f32 %v1234, %v1245
        %v1248 = vmul.f32 %v1235, %v1245
        %v1249 = vmul.f32 %v1236, %v1245
        %v1250 = vmul.f32 %v1237, %v1245
        %v1251 = vmul.f32 %v1238, %v1245
        %v1252 = vmul.f32 %v1239, %v1245
        %v1253 = vmul.f32 %v1240, %v1245
        %v1254 = vadd.f32 %v1225, %v1246
        %v1255 = vadd.f32 %v1226, %v1247
        %v1256 = vadd.f32 %v1227, %v1248
        %v1257 = vadd.f32 %v1228, %v1249
        %v1258 = vadd.f32 %v1229, %v1250
        %v1259 = vadd.f32 %v1230, %v1251
        %v1260 = vadd.f32 %v1231, %v1252
        %v1261 = vadd.f32 %v1232, %v1253
        %v1262 = vld [vmem:[%s1125] sm:$0xff]
        %v1263 = vld [vmem:[%s1125 + $0x10] sm:$0xff]
        %v1264 = vld [vmem:[%s1125 + $0x20] sm:$0xff]
        %v1265 = vld [vmem:[%s1125 + $0x30] sm:$0xff]
        %v1266 = vld [vmem:[%s1125 + $0x40] sm:$0xff]
        %v1267 = vld [vmem:[%s1125 + $0x50] sm:$0xff]
        %v1268 = vld [vmem:[%s1125 + $0x60] sm:$0xff]
        %v1269 = vld [vmem:[%s1125 + $0x70] sm:$0xff]
        %v1270 = vld [vmem:[%s2 + $0x4] sm:$0x1]
        %v1271 = vlaneseq
        %v1272 = vshrl.u32 %v1271, 7
        %v1273 = vsub.s32 0, %v1272
        %v1274 = vrot.slane %v1270, %v1273
        %v1275 = vmul.f32 %v1262, %v1274
        %v1276 = vmul.f32 %v1263, %v1274
        %v1277 = vmul.f32 %v1264, %v1274
        %v1278 = vmul.f32 %v1265, %v1274
        %v1279 = vmul.f32 %v1266, %v1274
        %v1280 = vmul.f32 %v1267, %v1274
        %v1281 = vmul.f32 %v1268, %v1274
        %v1282 = vmul.f32 %v1269, %v1274
        %v1283 = vadd.f32 %v1254, %v1275
        %v1284 = vadd.f32 %v1255, %v1276
        %v1285 = vadd.f32 %v1256, %v1277
        %v1286 = vadd.f32 %v1257, %v1278
        %v1287 = vadd.f32 %v1258, %v1279
        %v1288 = vadd.f32 %v1259, %v1280
        %v1289 = vadd.f32 %v1260, %v1281
        %v1290 = vadd.f32 %v1261, %v1282
        %v1291 = vld [vmem:[%s1106 + $0x1] sm:$0xff]
        %v1292 = vld [vmem:[%s1106 + $0x11] sm:$0xff]
        %v1293 = vld [vmem:[%s1106 + $0x21] sm:$0xff]
        %v1294 = vld [vmem:[%s1106 + $0x31] sm:$0xff]
        %v1295 = vld [vmem:[%s1106 + $0x41] sm:$0xff]
        %v1296 = vld [vmem:[%s1106 + $0x51] sm:$0xff]
        %v1297 = vld [vmem:[%s1106 + $0x61] sm:$0xff]
        %v1298 = vld [vmem:[%s1106 + $0x71] sm:$0xff]
        %v1299 = vld [vmem:[%s2 + $0x5] sm:$0x1]
        %v1300 = vlaneseq
        %v1301 = vshrl.u32 %v1300, 7
        %v1302 = vsub.s32 0, %v1301
        %v1303 = vrot.slane %v1299, %v1302
        %v1304 = vmul.f32 %v1291, %v1303
        %v1305 = vmul.f32 %v1292, %v1303
        %v1306 = vmul.f32 %v1293, %v1303
        %v1307 = vmul.f32 %v1294, %v1303
        %v1308 = vmul.f32 %v1295, %v1303
        %v1309 = vmul.f32 %v1296, %v1303
        %v1310 = vmul.f32 %v1297, %v1303
        %v1311 = vmul.f32 %v1298, %v1303
        %v1312 = vadd.f32 %v1283, %v1304
        %v1313 = vadd.f32 %v1284, %v1305
        %v1314 = vadd.f32 %v1285, %v1306
        %v1315 = vadd.f32 %v1286, %v1307
        %v1316 = vadd.f32 %v1287, %v1308
        %v1317 = vadd.f32 %v1288, %v1309
        %v1318 = vadd.f32 %v1289, %v1310
        %v1319 = vadd.f32 %v1290, %v1311
        %s1320 = scalar_lea.vmem [#allocation2], 16
        %v1321 = vld [vmem:[%s1320] sm:$0xff]
        %v1322 = vld [vmem:[%s1320 + $0x10] sm:$0xff]
        %v1323 = vld [vmem:[%s1320 + $0x20] sm:$0xff]
        %v1324 = vld [vmem:[%s1320 + $0x30] sm:$0xff]
        %v1325 = vld [vmem:[%s1320 + $0x40] sm:$0xff]
        %v1326 = vld [vmem:[%s1320 + $0x50] sm:$0xff]
        %v1327 = vld [vmem:[%s1320 + $0x60] sm:$0xff]
        %v1328 = vld [vmem:[%s1320 + $0x70] sm:$0xff]
        %v1329 = vld [vmem:[%s2 + $0x6] sm:$0x1]
        %v1330 = vlaneseq
        %v1331 = vshrl.u32 %v1330, 7
        %v1332 = vsub.s32 0, %v1331
        %v1333 = vrot.slane %v1329, %v1332
        %v1334 = vmul.f32 %v1321, %v1333
        %v1335 = vmul.f32 %v1322, %v1333
        %v1336 = vmul.f32 %v1323, %v1333
        %v1337 = vmul.f32 %v1324, %v1333
        %v1338 = vmul.f32 %v1325, %v1333
        %v1339 = vmul.f32 %v1326, %v1333
        %v1340 = vmul.f32 %v1327, %v1333
        %v1341 = vmul.f32 %v1328, %v1333
        %v1342 = vadd.f32 %v1312, %v1334
        %v1343 = vadd.f32 %v1313, %v1335
        %v1344 = vadd.f32 %v1314, %v1336
        %v1345 = vadd.f32 %v1315, %v1337
        %v1346 = vadd.f32 %v1316, %v1338
        %v1347 = vadd.f32 %v1317, %v1339
        %v1348 = vadd.f32 %v1318, %v1340
        %v1349 = vadd.f32 %v1319, %v1341
        %s1350 = scalar_lea.vmem [#allocation2], 160
        %v1351 = vld [vmem:[%s1350] sm:$0xff]
        %v1352 = vld [vmem:[%s1350 + $0x10] sm:$0xff]
        %v1353 = vld [vmem:[%s1350 + $0x20] sm:$0xff]
        %v1354 = vld [vmem:[%s1350 + $0x30] sm:$0xff]
        %v1355 = vld [vmem:[%s1350 + $0x40] sm:$0xff]
        %v1356 = vld [vmem:[%s1350 + $0x50] sm:$0xff]
        %v1357 = vld [vmem:[%s1350 + $0x60] sm:$0xff]
        %v1358 = vld [vmem:[%s1350 + $0x70] sm:$0xff]
        %v1359 = vld [vmem:[%s2 + $0x7] sm:$0x1]
        %v1360 = vlaneseq
        %v1361 = vshrl.u32 %v1360, 7
        %v1362 = vsub.s32 0, %v1361
        %v1363 = vrot.slane %v1359, %v1362
        %v1364 = vmul.f32 %v1351, %v1363
        %v1365 = vmul.f32 %v1352, %v1363
        %v1366 = vmul.f32 %v1353, %v1363
        %v1367 = vmul.f32 %v1354, %v1363
        %v1368 = vmul.f32 %v1355, %v1363
        %v1369 = vmul.f32 %v1356, %v1363
        %v1370 = vmul.f32 %v1357, %v1363
        %v1371 = vmul.f32 %v1358, %v1363
        %v1372 = vadd.f32 %v1342, %v1364
        %v1373 = vadd.f32 %v1343, %v1365
        %v1374 = vadd.f32 %v1344, %v1366
        %v1375 = vadd.f32 %v1345, %v1367
        %v1376 = vadd.f32 %v1346, %v1368
        %v1377 = vadd.f32 %v1347, %v1369
        %v1378 = vadd.f32 %v1348, %v1370
        %v1379 = vadd.f32 %v1349, %v1371
        %v1380 = vld [vmem:[%s1320 + $0x1] sm:$0xff]
        %v1381 = vld [vmem:[%s1320 + $0x11] sm:$0xff]
        %v1382 = vld [vmem:[%s1320 + $0x21] sm:$0xff]
        %v1383 = vld [vmem:[%s1320 + $0x31] sm:$0xff]
        %v1384 = vld [vmem:[%s1320 + $0x41] sm:$0xff]
        %v1385 = vld [vmem:[%s1320 + $0x51] sm:$0xff]
        %v1386 = vld [vmem:[%s1320 + $0x61] sm:$0xff]
        %v1387 = vld [vmem:[%s1320 + $0x71] sm:$0xff]
        %v1388 = vld [vmem:[%s2 + $0x8] sm:$0x1]
        %v1389 = vlaneseq
        %v1390 = vshrl.u32 %v1389, 7
        %v1391 = vsub.s32 0, %v1390
        %v1392 = vrot.slane %v1388, %v1391
        %v1393 = vmul.f32 %v1380, %v1392
        %v1394 = vmul.f32 %v1381, %v1392
        %v1395 = vmul.f32 %v1382, %v1392
        %v1396 = vmul.f32 %v1383, %v1392
        %v1397 = vmul.f32 %v1384, %v1392
        %v1398 = vmul.f32 %v1385, %v1392
        %v1399 = vmul.f32 %v1386, %v1392
        %v1400 = vmul.f32 %v1387, %v1392
        %v1401 = vadd.f32 %v1372, %v1393
        %v1402 = vadd.f32 %v1373, %v1394
        %v1403 = vadd.f32 %v1374, %v1395
        %v1404 = vadd.f32 %v1375, %v1396
        %v1405 = vadd.f32 %v1376, %v1397
        %v1406 = vadd.f32 %v1377, %v1398
        %v1407 = vadd.f32 %v1378, %v1399
        %v1408 = vadd.f32 %v1379, %v1400
        %v1409 = vld [vmem:[%s3] sm:$0x1]
        %v1411 = vlaneseq
        %v1412 = vshrl.u32 %v1411, 7
        %v1413 = vsub.s32 0, %v1412
        %v1414 = vrot.slane %v1409, %v1413
        %v1416 = vadd.f32 %v1401, %v1414
        %v1417 = vadd.f32 %v1402, %v1414
        %v1418 = vadd.f32 %v1403, %v1414
        %v1419 = vadd.f32 %v1404, %v1414
        %v1420 = vadd.f32 %v1405, %v1414
        %v1421 = vadd.f32 %v1406, %v1414
        %v1422 = vadd.f32 %v1407, %v1414
        %v1423 = vadd.f32 %v1408, %v1414
        %v1424 = vmax.f32 %v1416, 0.0
        %v1425 = vmax.f32 %v1417, 0.0
        %v1426 = vmax.f32 %v1418, 0.0
        %v1427 = vmax.f32 %v1419, 0.0
        %v1428 = vmax.f32 %v1420, 0.0
        %v1429 = vmax.f32 %v1421, 0.0
        %v1430 = vmax.f32 %v1422, 0.0
        %v1431 = vmax.f32 %v1423, 0.0
        %v1432 = vmin.f32 %v1424, 6.0
        %v1433 = vmin.f32 %v1425, 6.0
        %v1434 = vmin.f32 %v1426, 6.0
        %v1435 = vmin.f32 %v1427, 6.0
        %v1436 = vmin.f32 %v1428, 6.0
        %v1437 = vmin.f32 %v1429, 6.0
        %v1438 = vmin.f32 %v1430, 6.0
        %v1439 = vmin.f32 %v1431, 6.0
        %v1440 = vpack.c.bf16 %v1432, %v1432
        %v1441 = vpack.c.bf16 %v1433, %v1433
        %v1442 = vpack.c.bf16 %v1434, %v1434
        %v1443 = vpack.c.bf16 %v1435, %v1435
        %v1444 = vpack.c.bf16 %v1436, %v1436
        %v1445 = vpack.c.bf16 %v1437, %v1437
        %v1446 = vpack.c.bf16 %v1438, %v1438
        %v1447 = vpack.c.bf16 %v1439, %v1439
        %vm1448 = vcmask 191488
        %1449 = vst.msk [vmem:[%s221] sm:$0xf] %vm1448, %v1440
        %1450 = vst.msk [vmem:[%s221 + $0x4] sm:$0xf] %vm1448, %v1441
        %1451 = vst.msk [vmem:[%s221 + $0x8] sm:$0xf] %vm1448, %v1442
        %1452 = vst.msk [vmem:[%s221 + $0xc] sm:$0xf] %vm1448, %v1443
        %1453 = vst.msk [vmem:[%s221 + $0x10] sm:$0xf] %vm1448, %v1444
        %1454 = vst.msk [vmem:[%s221 + $0x14] sm:$0xf] %vm1448, %v1445
        %1455 = vst.msk [vmem:[%s221 + $0x18] sm:$0xf] %vm1448, %v1446
        %1456 = vst.msk [vmem:[%s221 + $0x1c] sm:$0xf] %vm1448, %v1447
        %v1457 = vld [vmem:[%s227] sm:$0x1]
        %v1458 = vsel %vm1068, %v1432, 0.0
        %v1459 = vsel %vm1068, %v1433, 0.0
        %v1460 = vadd.f32 %v1458, %v1459
        %v1461 = vsel %vm1068, %v1434, 0.0
        %v1462 = vadd.f32 %v1460, %v1461
        %v1463 = vsel %vm1068, %v1435, 0.0
        %v1464 = vadd.f32 %v1462, %v1463
        %v1465 = vsel %vm1068, %v1436, 0.0
        %v1466 = vadd.f32 %v1464, %v1465
        %v1467 = vsel %vm1068, %v1437, 0.0
        %v1468 = vadd.f32 %v1466, %v1467
        %v1469 = vsel %vm1068, %v1438, 0.0
        %v1470 = vadd.f32 %v1468, %v1469
        %v1471 = vsel %vm1068, %v1439, 0.0
        %v1472 = vadd.f32 %v1470, %v1471
        %v1473 = vrot.slane %v1472, 4
        %v1474 = vadd.f32 %v1472, %v1473
        %v1475 = vrot.slane %v1474, 2
        %v1476 = vadd.f32 %v1474, %v1475
        %v1477 = vrot.slane %v1476, 1
        %v1478 = vadd.f32 %v1476, %v1477
        %v1479 = vadd.f32 %v1457, %v1478
        %1480 = vst.msk [vmem:[%s227] sm:$0x1] %vm1144, %v1479
        %s1481 = sand.u32 %s120, 1
        %s1482 = scalar_lea.sflag [#allocation4], %s1481
        %s1483 = sand.u32 %s120, 1
        %s1484 = smul.addr %s1483, 32
        %s1485 = scalar_lea.vmem [#allocation3], %s1484
        %s1486 = sand.u32 %s146, 1
        %s1487 = scalar_lea.sflag [#allocation6], %s1486
        %s1488 = sand.u32 %s146, 1
        %s1489 = scalar_lea.vmem [#allocation5], %s1488
        // Predicated region
        $region37: #{tpu_custom_call.1} parent=35 // pred_check
          %p1490 = pneg %p130
        $region38: #{tpu_custom_call.1} parent=35 // pred_check_branch
          %1492 = sbr.rel (%p1490) target = $region40
        $region39: #{tpu_custom_call.1} parent=35 // pred_region
          %s1494 = ssub.s32 512, 512
          %1495 = vsyncadd %s1482, %s1494
          %s1496 = smul.addr %s23, 8
          %s1497 = smul.addr %s1496, 64
          %s1498 = scalar_lea.hbm %s4, %s1497
          %s1499 = sshll.u32 %s1485, 4
          %s1500 = int_to_ptr.vmem [resolvable:$true] %s1499
          %1505 = dma.vmem_to_hbm [thread:$0]  %s1500, 512, %s1498, %s1482, 64, 64, 4
        $region40: #{tpu_custom_call.1} parent=35 // pred_fallthru
          _
        // Predicated region
        $region41: #{tpu_custom_call.1} parent=35 // pred_check
          %p1506 = pneg %p156
        $region42: #{tpu_custom_call.1} parent=35 // pred_check_branch
          %1508 = sbr.rel (%p1506) target = $region44
        $region43: #{tpu_custom_call.1} parent=35 // pred_region
          %s1510 = ssub.s32 16, 16
          %1511 = vsyncadd %s1487, %s1510
          %s1512 = smul.addr %s23, 16
          %s1513 = scalar_lea.hbm %s5, %s1512
          %s1515 = sshll.u32 %s1489, 4
          %s1516 = int_to_ptr.vmem [resolvable:$true] %s1515
          %1518 = dma.vmem_to_hbm [thread:$0]  %s1516, 16, %s1513, %s1487
        $region44: #{tpu_custom_call.1} parent=35 // pred_fallthru
          _
      $region36: #{tpu_custom_call.1} parent=5 // pred_fallthru
        _
      %p1519 = scmp.le.s32.totalorder 2, %s18
      // Predicated region
      $region45: #{tpu_custom_call.1} parent=5 // pred_check
        %p1520 = pneg %p1519
      $region46: #{tpu_custom_call.1} parent=5 // pred_check_branch
        %1522 = sbr.rel (%p1520) target = $region48
      $region47: #{tpu_custom_call.1} parent=5 // pred_region
        %s1523 = ssub.s32 %s18, 2
        // Predicated region
        $region49: #{tpu_custom_call.1} parent=47 // pred_check
          %p1524 = pneg %p136
        $region50: #{tpu_custom_call.1} parent=47 // pred_check_branch
          %1526 = sbr.rel (%p1524) target = $region52
        $region51: #{tpu_custom_call.1} parent=47 // pred_region
          %s1527 = sand.u32 %s121, 1
          %s1528 = scalar_lea.sflag [#allocation4], %s1527
          %s1529 = sand.u32 %s121, 1
          %s1530 = smul.addr %s1529, 32
          %s1531 = scalar_lea.vmem [#allocation3], %s1530
          %1532 = dma.done %s1528, 512
        $region52: #{tpu_custom_call.1} parent=47 // pred_fallthru
          _
        // Predicated region
        $region53: #{tpu_custom_call.1} parent=47 // pred_check
          %p1533 = pneg %p162
        $region54: #{tpu_custom_call.1} parent=47 // pred_check_branch
          %1535 = sbr.rel (%p1533) target = $region56
        $region55: #{tpu_custom_call.1} parent=47 // pred_region
          %s1536 = sand.u32 %s147, 1
          %s1537 = scalar_lea.sflag [#allocation6], %s1536
          %s1538 = sand.u32 %s147, 1
          %s1539 = scalar_lea.vmem [#allocation5], %s1538
          %1540 = dma.done %s1537, 16
        $region56: #{tpu_custom_call.1} parent=47 // pred_fallthru
          _
      $region48: #{tpu_custom_call.1} parent=5 // pred_fallthru
        _
    $region6: #{tpu_custom_call.1} parent=1 // loop_footer
      %s22 = sadd.s32 1, %s18
    $region7: #{tpu_custom_call.1} parent=1 // loop_footer_branch
      %17 = sbr.rel target = $region3
    $region8: #{tpu_custom_call.1} parent=1 // loop_exit
      _
    %1541 = vsyncpa [#allocation4], 1
    %s1542 = scalar_lea.sflag [#allocation4], 1
    %1543 = vsyncpa %s1542, 1
    %1544 = vsyncpa [#allocation6], 1
    %s1545 = scalar_lea.sflag [#allocation6], 1
    %1546 = vsyncpa %s1545, 1

</llo_original>
